<compile_context>
chip_gen: v6e
topology: v6e:2x2x1
jax: 0.10.0
libtpu: 0.0.40
codegen_flags: <defaults>
</compile_context>

<pallas_src>
import jax
import jax.numpy as jnp
from jax import lax
from jax.experimental import pallas as pl
from jax.experimental.pallas import tpu as pltpu


# -----------------------------------------------------------------------------
# Kernel
# -----------------------------------------------------------------------------
def _parception_kernel(
    rgb_ref, depth_ref,                      # inputs               (B,512) f32
    w21_ref, b21_ref,                        # linear2_1            (512,256) bf16, (1,256) f32
    w22_ref, b22_ref,                        # linear2_2            (512,256) bf16, (1,256) f32
    bwr_ref, bbr_ref, bvr_ref,               # rgb_balancing        (256,256) bf16, (1,256) f32, (1,256) f32
    bwd_ref, bbd_ref, bvd_ref,               # depth_balancing      (256,256) bf16, (1,256) f32, (1,256) f32
    bng_ref, bnb_ref,                        # BatchNorm1d gamma/beta (1,256) f32
    pw1_ref, pb1_ref,                        # parception Linear 256->256 (bf16 / f32)
    wdiff_ref, bdiff_ref,                    # fused-tail logit difference (1,256) f32, (1,1) f32
    out_ref,                                 # output               (B,2) f32
):
    f32 = jnp.float32
    bf16 = jnp.bfloat16

    # Cast activations to bf16 in-kernel (inputs arrive as f32; no wrapper cast).
    rgb = rgb_ref[...].astype(bf16)
    dep = depth_ref[...].astype(bf16)

    # --- h_rgb / h_depth : Linear(512 -> 256), bf16 MXU, f32 accumulate -------
    h_rgb = jnp.dot(rgb, w21_ref[...], preferred_element_type=f32) + b21_ref[...]
    h_depth = jnp.dot(dep, w22_ref[...], preferred_element_type=f32) + b22_ref[...]

    # --- balancing(x) = tanh(x @ W + b) . v  -> (B, 1) ------------------------
    # v-projection done as VPU multiply + XLU lane reduction (no N=1 matmul).
    t_rgb = jnp.tanh(
        jnp.dot(h_rgb.astype(bf16), bwr_ref[...], preferred_element_type=f32) + bbr_ref[...]
    )
    e_rgb = jnp.sum(t_rgb * bvr_ref[...], axis=-1, keepdims=True)              # (B,1)

    t_dep = jnp.tanh(
        jnp.dot(h_depth.astype(bf16), bwd_ref[...], preferred_element_type=f32) + bbd_ref[...]
    )
    e_depth = jnp.sum(t_dep * bvd_ref[...], axis=-1, keepdims=True)            # (B,1)

    # --- modality weighting -----------------------------------------------------
    # exp(e_r)/(exp(e_r)+exp(e_d)) == sigmoid(e_r - e_d)  (overflow-safe, one EUP exp)
    alpha_rgb = 1.0 / (1.0 + jnp.exp(e_depth - e_rgb))
    balanced = alpha_rgb * h_rgb + (1.0 - alpha_rgb) * h_depth                 # (B,256) f32

    # --- BatchNorm1d(256): training-mode batch statistics (biased variance) ----
    mean = jnp.mean(balanced, axis=0, keepdims=True)
    var = jnp.mean((balanced - mean) ** 2, axis=0, keepdims=True)
    x_bn = (balanced - mean) * lax.rsqrt(var + 1e-5) * bng_ref[...] + bnb_ref[...]

    # --- MLP head: Linear(256,256) -> ReLU --------------------------------------
    h1 = jnp.maximum(
        jnp.dot(x_bn.astype(bf16), pw1_ref[...], preferred_element_type=f32) + pb1_ref[...],
        0.0,
    )

    # --- fused Linear(256,16)->Linear(16,2) -> Softmax(dim=1) -------------------
    # softmax over 2 classes == [sigmoid(l0-l1), 1-sigmoid(l0-l1)].
    # w_diff/b_diff encode the logit difference, so this is one VPU multiply +
    # one XLU lane-sum + one EUP exp (no lane-starved (256,2) MXU pass).
    d = jnp.sum(h1 * wdiff_ref[...], axis=-1, keepdims=True) + bdiff_ref[...]  # (B,1)
    p0 = 1.0 / (1.0 + jnp.exp(-d))
    col = lax.broadcasted_iota(jnp.int32, (out_ref.shape[0], 2), 1)
    out_ref[...] = jnp.where(col == 0, p0, 1.0 - p0)


# -----------------------------------------------------------------------------
# One-time parameter preparation (run OUTSIDE the jitted forward, cache result)
# -----------------------------------------------------------------------------
def prepare_params(p):
    """Fold the affine tail and cast weights to bf16 once.

    (x @ W2 + b2) @ W3 + b3 == x @ (W2 W3) + (b2 W3 + b3); for the 2-class
    softmax only the logit difference matters, so we keep only column 0 - column 1.
    """
    bf16 = jnp.bfloat16
    w23 = p["p2_W"] @ p["p3_W"]                          # (256, 2) f32
    b23 = p["p2_b"] @ p["p3_W"] + p["p3_b"]              # (1, 2)   f32
    w_diff = (w23[:, 0] - w23[:, 1]).reshape(1, 256)     # (1, 256) f32
    b_diff = (b23[:, 0] - b23[:, 1]).reshape(1, 1)       # (1, 1)   f32

    prepared = (
        p["w21"].astype(bf16), p["b21"],
        p["w22"].astype(bf16), p["b22"],
        p["bal_rgb_W"].astype(bf16), p["bal_rgb_b"], p["bal_rgb_v"],
        p["bal_dep_W"].astype(bf16), p["bal_dep_b"], p["bal_dep_v"],
        p["bn_gamma"], p["bn_beta"],
        p["p1_W"].astype(bf16), p["p1_b"],
        w_diff, b_diff,
    )
    # Materialize now so the jitted forward sees ready device arrays.
    return tuple(jax.block_until_ready(x) for x in prepared)


# -----------------------------------------------------------------------------
# Jitted forward: a single pallas_call, nothing else
# -----------------------------------------------------------------------------
@jax.jit
def parception_branch_forward(input_rgb, input_depth, prepared):
    """input_rgb, input_depth: (B, 512) float32. Returns (B, 2) softmax probs.

    input_meta is ignored by the PyTorch module's forward, so it is omitted.
    """
    B = input_rgb.shape[0]
    vmem_spec = pl.BlockSpec(memory_space=pltpu.MemorySpace.VMEM)
    n_in = 2 + len(prepared)
    return pl.pallas_call(
        _parception_kernel,
        out_shape=jax.ShapeDtypeStruct((B, 2), jnp.float32),
        in_specs=[vmem_spec] * n_in,
        out_specs=vmem_spec,
    )(input_rgb, input_depth, *prepared)


# -----------------------------------------------------------------------------
# Synthetic parameters + pure-JAX reference
# -----------------------------------------------------------------------------
def make_params(key):
    """Deterministic synthetic parameters matching the module's shapes.

    Weights stored as [in, out]; nn.Linear semantics preserved (x @ W + b).
    """
    keys = jax.random.split(key, 14)
    s = 0.05  # small scale keeps tanh/exp/sigmoid well-conditioned

    def w(k, shape, scale=s):
        return (scale * jax.random.normal(k, shape)).astype(jnp.float32)

    return {
        # linear2_1 / linear2_2 : 512 -> 256
        "w21": w(keys[0], (512, 256)), "b21": w(keys[1], (1, 256)),
        "w22": w(keys[2], (512, 256)), "b22": w(keys[3], (1, 256)),
        # balancing(256, 256): b, v are zero in the torch init but we use small
        # non-zero values to exercise the full compute path.
        "bal_rgb_W": w(keys[4], (256, 256)),
        "bal_rgb_b": w(keys[5], (1, 256)),
        "bal_rgb_v": w(keys[6], (1, 256)),
        "bal_dep_W": w(keys[7], (256, 256)),
        "bal_dep_b": w(keys[8], (1, 256)),
        "bal_dep_v": w(keys[9], (1, 256)),
        # BatchNorm1d(256) affine params (torch default init: gamma=1, beta=0)
        "bn_gamma": jnp.ones((1, 256), jnp.float32),
        "bn_beta": jnp.zeros((1, 256), jnp.float32),
        # parception head
        "p1_W": w(keys[10], (256, 256)), "p1_b": jnp.zeros((1, 256), jnp.float32),
        "p2_W": w(keys[11], (256, 16)),  "p2_b": jnp.zeros((1, 16), jnp.float32),
        "p3_W": w(keys[12], (16, 2)),    "p3_b": jnp.zeros((1, 2), jnp.float32),
    }


def _reference_forward(input_rgb, input_depth, p):
    """Pure-JAX f32 reference mirroring the torch forward (no fusion, no bf16)."""
    h_rgb = input_rgb @ p["w21"] + p["b21"]
    h_depth = input_depth @ p["w22"] + p["b22"]
    e_rgb = jnp.sum(jnp.tanh(h_rgb @ p["bal_rgb_W"] + p["bal_rgb_b"]) * p["bal_rgb_v"],
                    axis=-1, keepdims=True)
    e_dep = jnp.sum(jnp.tanh(h_depth @ p["bal_dep_W"] + p["bal_dep_b"]) * p["bal_dep_v"],
                    axis=-1, keepdims=True)
    es = jnp.exp(e_rgb) + jnp.exp(e_dep)
    x = (jnp.exp(e_rgb) / es) * h_rgb + (jnp.exp(e_dep) / es) * h_depth
    mean = jnp.mean(x, axis=0, keepdims=True)
    var = jnp.mean((x - mean) ** 2, axis=0, keepdims=True)
    x = (x - mean) / jnp.sqrt(var + 1e-5) * p["bn_gamma"] + p["bn_beta"]
    x = jnp.maximum(x @ p["p1_W"] + p["p1_b"], 0.0)
    x = x @ p["p2_W"] + p["p2_b"]
    logits = x @ p["p3_W"] + p["p3_b"]
    return jax.nn.softmax(logits, axis=1)


if __name__ == "__main__":
    key = jax.random.PRNGKey(0)
    k_rgb, k_dep, k_param = jax.random.split(key, 3)

    B = 8  # small batch (multiple of 8 sublanes)
    input_rgb = jax.random.normal(k_rgb, (B, 512), dtype=jnp.float32)
    input_depth = jax.random.normal(k_dep, (B, 512), dtype=jnp.float32)
    # input_meta is accepted by the torch forward but never used -> omitted.

    params = make_params(k_param)
    prepared = prepare_params(params)   # one-time: fused tail + bf16 weight casts

    out = parception_branch_forward(input_rgb, input_depth, prepared)
    out = jax.block_until_ready(out)

    ref = _reference_forward(input_rgb, input_depth, params)
    assert out.shape == (B, 2)
    assert bool(jnp.all(jnp.isfinite(out)))
    # bf16 matmuls vs the f32 reference -> modest tolerance on the softmax probs
    assert bool(jnp.allclose(out, ref, atol=1e-2, rtol=1e-2))
    # rows sum to 1 (softmax)
    assert bool(jnp.allclose(jnp.sum(out, axis=1), 1.0, atol=1e-5))

    print("KERNEL_OK")
</pallas_src>

<mosaic_0001>
module attributes {stable_mosaic.version = 11 : i64} {
  func.func @_parception_kernel(%arg0: memref<8x512xf32, #tpu.memory_space<vmem>>, %arg1: memref<8x512xf32, #tpu.memory_space<vmem>>, %arg2: memref<512x256xbf16, #tpu.memory_space<vmem>>, %arg3: memref<1x256xf32, #tpu.memory_space<vmem>>, %arg4: memref<512x256xbf16, #tpu.memory_space<vmem>>, %arg5: memref<1x256xf32, #tpu.memory_space<vmem>>, %arg6: memref<256x256xbf16, #tpu.memory_space<vmem>>, %arg7: memref<1x256xf32, #tpu.memory_space<vmem>>, %arg8: memref<1x256xf32, #tpu.memory_space<vmem>>, %arg9: memref<256x256xbf16, #tpu.memory_space<vmem>>, %arg10: memref<1x256xf32, #tpu.memory_space<vmem>>, %arg11: memref<1x256xf32, #tpu.memory_space<vmem>>, %arg12: memref<1x256xf32, #tpu.memory_space<vmem>>, %arg13: memref<1x256xf32, #tpu.memory_space<vmem>>, %arg14: memref<256x256xbf16, #tpu.memory_space<vmem>>, %arg15: memref<1x256xf32, #tpu.memory_space<vmem>>, %arg16: memref<1x256xf32, #tpu.memory_space<vmem>>, %arg17: memref<1x1xf32, #tpu.memory_space<vmem>>, %arg18: memref<8x2xf32, #tpu.memory_space<vmem>>) attributes {dimension_semantics = [], scalar_prefetch = 0 : i64, scratch_operands = 0 : i64, tpu.core_type = #tpu.core_type<tc>} {
    %c0 = arith.constant 0 : index
    %c0_0 = arith.constant 0 : index
    %0 = vector.load %arg0[%c0, %c0_0] : memref<8x512xf32, #tpu.memory_space<vmem>>, vector<8x512xf32>
    %1 = arith.truncf %0 : vector<8x512xf32> to vector<8x512xbf16>
    %c0_1 = arith.constant 0 : index
    %c0_2 = arith.constant 0 : index
    %2 = vector.load %arg1[%c0_1, %c0_2] : memref<8x512xf32, #tpu.memory_space<vmem>>, vector<8x512xf32>
    %3 = arith.truncf %2 : vector<8x512xf32> to vector<8x512xbf16>
    %c0_3 = arith.constant 0 : index
    %c0_4 = arith.constant 0 : index
    %4 = vector.load %arg2[%c0_3, %c0_4] : memref<512x256xbf16, #tpu.memory_space<vmem>>, vector<512x256xbf16>
    %cst = arith.constant dense<0.000000e+00> : vector<8x256xf32>
    %5 = tpu.matmul %1, %4, %cst {dimension_numbers = #tpu.dot_dimension_numbers<[1], [0], [0], [1], [0, 0, 1, 1], [], []>} : vector<8x512xbf16>, vector<512x256xbf16>, vector<8x256xf32> -> vector<8x256xf32>
    %c0_5 = arith.constant 0 : index
    %c0_6 = arith.constant 0 : index
    %6 = vector.load %arg3[%c0_5, %c0_6] : memref<1x256xf32, #tpu.memory_space<vmem>>, vector<1x256xf32>
    %7 = vector.broadcast %6 : vector<1x256xf32> to vector<8x256xf32>
    %8 = arith.addf %5, %7 : vector<8x256xf32>
    %c0_7 = arith.constant 0 : index
    %c0_8 = arith.constant 0 : index
    %9 = vector.load %arg4[%c0_7, %c0_8] : memref<512x256xbf16, #tpu.memory_space<vmem>>, vector<512x256xbf16>
    %cst_9 = arith.constant dense<0.000000e+00> : vector<8x256xf32>
    %10 = tpu.matmul %3, %9, %cst_9 {dimension_numbers = #tpu.dot_dimension_numbers<[1], [0], [0], [1], [0, 0, 1, 1], [], []>} : vector<8x512xbf16>, vector<512x256xbf16>, vector<8x256xf32> -> vector<8x256xf32>
    %c0_10 = arith.constant 0 : index
    %c0_11 = arith.constant 0 : index
    %11 = vector.load %arg5[%c0_10, %c0_11] : memref<1x256xf32, #tpu.memory_space<vmem>>, vector<1x256xf32>
    %12 = vector.broadcast %11 : vector<1x256xf32> to vector<8x256xf32>
    %13 = arith.addf %10, %12 : vector<8x256xf32>
    %14 = arith.truncf %8 : vector<8x256xf32> to vector<8x256xbf16>
    %c0_12 = arith.constant 0 : index
    %c0_13 = arith.constant 0 : index
    %15 = vector.load %arg6[%c0_12, %c0_13] : memref<256x256xbf16, #tpu.memory_space<vmem>>, vector<256x256xbf16>
    %cst_14 = arith.constant dense<0.000000e+00> : vector<8x256xf32>
    %16 = tpu.matmul %14, %15, %cst_14 {dimension_numbers = #tpu.dot_dimension_numbers<[1], [0], [0], [1], [0, 0, 1, 1], [], []>} : vector<8x256xbf16>, vector<256x256xbf16>, vector<8x256xf32> -> vector<8x256xf32>
    %c0_15 = arith.constant 0 : index
    %c0_16 = arith.constant 0 : index
    %17 = vector.load %arg7[%c0_15, %c0_16] : memref<1x256xf32, #tpu.memory_space<vmem>>, vector<1x256xf32>
    %18 = vector.broadcast %17 : vector<1x256xf32> to vector<8x256xf32>
    %19 = arith.addf %16, %18 : vector<8x256xf32>
    %20 = math.tanh %19 : vector<8x256xf32>
    %c0_17 = arith.constant 0 : index
    %c0_18 = arith.constant 0 : index
    %21 = vector.load %arg8[%c0_17, %c0_18] : memref<1x256xf32, #tpu.memory_space<vmem>>, vector<1x256xf32>
    %22 = vector.broadcast %21 : vector<1x256xf32> to vector<8x256xf32>
    %23 = arith.mulf %20, %22 : vector<8x256xf32>
    %cst_19 = arith.constant dense<0.000000e+00> : vector<8xf32>
    %24 = vector.multi_reduction <add>, %23, %cst_19 [1] : vector<8x256xf32> to vector<8xf32>
    %25 = vector.shape_cast %24 : vector<8xf32> to vector<8x1xf32>
    %26 = arith.truncf %13 : vector<8x256xf32> to vector<8x256xbf16>
    %c0_20 = arith.constant 0 : index
    %c0_21 = arith.constant 0 : index
    %27 = vector.load %arg9[%c0_20, %c0_21] : memref<256x256xbf16, #tpu.memory_space<vmem>>, vector<256x256xbf16>
    %cst_22 = arith.constant dense<0.000000e+00> : vector<8x256xf32>
    %28 = tpu.matmul %26, %27, %cst_22 {dimension_numbers = #tpu.dot_dimension_numbers<[1], [0], [0], [1], [0, 0, 1, 1], [], []>} : vector<8x256xbf16>, vector<256x256xbf16>, vector<8x256xf32> -> vector<8x256xf32>
    %c0_23 = arith.constant 0 : index
    %c0_24 = arith.constant 0 : index
    %29 = vector.load %arg10[%c0_23, %c0_24] : memref<1x256xf32, #tpu.memory_space<vmem>>, vector<1x256xf32>
    %30 = vector.broadcast %29 : vector<1x256xf32> to vector<8x256xf32>
    %31 = arith.addf %28, %30 : vector<8x256xf32>
    %32 = math.tanh %31 : vector<8x256xf32>
    %c0_25 = arith.constant 0 : index
    %c0_26 = arith.constant 0 : index
    %33 = vector.load %arg11[%c0_25, %c0_26] : memref<1x256xf32, #tpu.memory_space<vmem>>, vector<1x256xf32>
    %34 = vector.broadcast %33 : vector<1x256xf32> to vector<8x256xf32>
    %35 = arith.mulf %32, %34 : vector<8x256xf32>
    %cst_27 = arith.constant dense<0.000000e+00> : vector<8xf32>
    %36 = vector.multi_reduction <add>, %35, %cst_27 [1] : vector<8x256xf32> to vector<8xf32>
    %37 = vector.shape_cast %36 : vector<8xf32> to vector<8x1xf32>
    %38 = arith.subf %37, %25 : vector<8x1xf32>
    %39 = math.exp %38 : vector<8x1xf32>
    %cst_28 = arith.constant 1.000000e+00 : f32
    %40 = vector.broadcast %cst_28 : f32 to vector<8x1xf32>
    %41 = arith.addf %40, %39 : vector<8x1xf32>
    %cst_29 = arith.constant 1.000000e+00 : f32
    %42 = vector.broadcast %cst_29 : f32 to vector<8x1xf32>
    %43 = arith.divf %42, %41 : vector<8x1xf32>
    %44 = vector.broadcast %43 : vector<8x1xf32> to vector<8x256xf32>
    %45 = arith.mulf %44, %8 : vector<8x256xf32>
    %cst_30 = arith.constant 1.000000e+00 : f32
    %46 = vector.broadcast %cst_30 : f32 to vector<8x1xf32>
    %47 = arith.subf %46, %43 : vector<8x1xf32>
    %48 = vector.broadcast %47 : vector<8x1xf32> to vector<8x256xf32>
    %49 = arith.mulf %48, %13 : vector<8x256xf32>
    %50 = arith.addf %45, %49 : vector<8x256xf32>
    %cst_31 = arith.constant dense<0.000000e+00> : vector<256xf32>
    %51 = vector.multi_reduction <add>, %50, %cst_31 [0] : vector<8x256xf32> to vector<256xf32>
    %52 = vector.shape_cast %51 : vector<256xf32> to vector<1x256xf32>
    %cst_32 = arith.constant 8.000000e+00 : f32
    %53 = vector.broadcast %cst_32 : f32 to vector<1x256xf32>
    %54 = arith.divf %52, %53 : vector<1x256xf32>
    %55 = vector.broadcast %54 : vector<1x256xf32> to vector<8x256xf32>
    %56 = arith.subf %50, %55 : vector<8x256xf32>
    %57 = arith.mulf %56, %56 : vector<8x256xf32>
    %cst_33 = arith.constant dense<0.000000e+00> : vector<256xf32>
    %58 = vector.multi_reduction <add>, %57, %cst_33 [0] : vector<8x256xf32> to vector<256xf32>
    %59 = vector.shape_cast %58 : vector<256xf32> to vector<1x256xf32>
    %cst_34 = arith.constant 8.000000e+00 : f32
    %60 = vector.broadcast %cst_34 : f32 to vector<1x256xf32>
    %61 = arith.divf %59, %60 : vector<1x256xf32>
    %62 = vector.broadcast %54 : vector<1x256xf32> to vector<8x256xf32>
    %63 = arith.subf %50, %62 : vector<8x256xf32>
    %cst_35 = arith.constant 9.99999974E-6 : f32
    %64 = vector.broadcast %cst_35 : f32 to vector<1x256xf32>
    %65 = arith.addf %61, %64 : vector<1x256xf32>
    %66 = math.rsqrt %65 : vector<1x256xf32>
    %67 = vector.broadcast %66 : vector<1x256xf32> to vector<8x256xf32>
    %68 = arith.mulf %63, %67 : vector<8x256xf32>
    %c0_36 = arith.constant 0 : index
    %c0_37 = arith.constant 0 : index
    %69 = vector.load %arg12[%c0_36, %c0_37] : memref<1x256xf32, #tpu.memory_space<vmem>>, vector<1x256xf32>
    %70 = vector.broadcast %69 : vector<1x256xf32> to vector<8x256xf32>
    %71 = arith.mulf %68, %70 : vector<8x256xf32>
    %c0_38 = arith.constant 0 : index
    %c0_39 = arith.constant 0 : index
    %72 = vector.load %arg13[%c0_38, %c0_39] : memref<1x256xf32, #tpu.memory_space<vmem>>, vector<1x256xf32>
    %73 = vector.broadcast %72 : vector<1x256xf32> to vector<8x256xf32>
    %74 = arith.addf %71, %73 : vector<8x256xf32>
    %75 = arith.truncf %74 : vector<8x256xf32> to vector<8x256xbf16>
    %c0_40 = arith.constant 0 : index
    %c0_41 = arith.constant 0 : index
    %76 = vector.load %arg14[%c0_40, %c0_41] : memref<256x256xbf16, #tpu.memory_space<vmem>>, vector<256x256xbf16>
    %cst_42 = arith.constant dense<0.000000e+00> : vector<8x256xf32>
    %77 = tpu.matmul %75, %76, %cst_42 {dimension_numbers = #tpu.dot_dimension_numbers<[1], [0], [0], [1], [0, 0, 1, 1], [], []>} : vector<8x256xbf16>, vector<256x256xbf16>, vector<8x256xf32> -> vector<8x256xf32>
    %c0_43 = arith.constant 0 : index
    %c0_44 = arith.constant 0 : index
    %78 = vector.load %arg15[%c0_43, %c0_44] : memref<1x256xf32, #tpu.memory_space<vmem>>, vector<1x256xf32>
    %79 = vector.broadcast %78 : vector<1x256xf32> to vector<8x256xf32>
    %80 = arith.addf %77, %79 : vector<8x256xf32>
    %cst_45 = arith.constant 0.000000e+00 : f32
    %81 = vector.broadcast %cst_45 : f32 to vector<8x256xf32>
    %82 = arith.maximumf %80, %81 : vector<8x256xf32>
    %c0_46 = arith.constant 0 : index
    %c0_47 = arith.constant 0 : index
    %83 = vector.load %arg16[%c0_46, %c0_47] : memref<1x256xf32, #tpu.memory_space<vmem>>, vector<1x256xf32>
    %84 = vector.broadcast %83 : vector<1x256xf32> to vector<8x256xf32>
    %85 = arith.mulf %82, %84 : vector<8x256xf32>
    %cst_48 = arith.constant dense<0.000000e+00> : vector<8xf32>
    %86 = vector.multi_reduction <add>, %85, %cst_48 [1] : vector<8x256xf32> to vector<8xf32>
    %87 = vector.shape_cast %86 : vector<8xf32> to vector<8x1xf32>
    %c0_49 = arith.constant 0 : index
    %c0_50 = arith.constant 0 : index
    %88 = vector.load %arg17[%c0_49, %c0_50] : memref<1x1xf32, #tpu.memory_space<vmem>>, vector<1x1xf32>
    %89 = vector.broadcast %88 : vector<1x1xf32> to vector<8x1xf32>
    %90 = arith.addf %87, %89 : vector<8x1xf32>
    %cst_51 = arith.constant 0.000000e+00 : f32
    %91 = vector.broadcast %cst_51 : f32 to vector<8x1xf32>
    %92 = arith.subf %91, %90 : vector<8x1xf32>
    %93 = math.exp %92 : vector<8x1xf32>
    %cst_52 = arith.constant 1.000000e+00 : f32
    %94 = vector.broadcast %cst_52 : f32 to vector<8x1xf32>
    %95 = arith.addf %94, %93 : vector<8x1xf32>
    %cst_53 = arith.constant 1.000000e+00 : f32
    %96 = vector.broadcast %cst_53 : f32 to vector<8x1xf32>
    %97 = arith.divf %96, %95 : vector<8x1xf32>
    %98 = tpu.iota {dimensions = array<i32: 1>} : vector<8x2xi32>
    %c0_i32 = arith.constant 0 : i32
    %99 = vector.broadcast %c0_i32 : i32 to vector<8x2xi32>
    %100 = arith.cmpi eq, %98, %99 : vector<8x2xi32>
    %cst_54 = arith.constant 1.000000e+00 : f32
    %101 = vector.broadcast %cst_54 : f32 to vector<8x1xf32>
    %102 = arith.subf %101, %97 : vector<8x1xf32>
    %103 = vector.shape_cast %97 : vector<8x1xf32> to vector<8x1xf32>
    %104 = vector.broadcast %103 : vector<8x1xf32> to vector<8x2xf32>
    %105 = vector.shape_cast %102 : vector<8x1xf32> to vector<8x1xf32>
    %106 = vector.broadcast %105 : vector<8x1xf32> to vector<8x2xf32>
    %107 = arith.select %100, %104, %106 : vector<8x2xi1>, vector<8x2xf32>
    %c0_55 = arith.constant 0 : index
    %c0_56 = arith.constant 0 : index
    %108 = vector.load %arg18[%c0_55, %c0_56] : memref<8x2xf32, #tpu.memory_space<vmem>>, vector<8x2xf32>
    tpu.vector_store %arg18[%c0_55, %c0_56], %107 {strides = array<i32>} : memref<8x2xf32, #tpu.memory_space<vmem>>, vector<8x2xf32>,
    return
  }
}

</mosaic_0001>

<llo_original>
// kernel: parception_branch_forward.1
$region0: #{parception_branch_forward.1}
  #allocation0 [shape = 'u32[]', space=smem, size = 0x4, offset = 0x4, fixed_abs, tag = 'smem constant byte address 0x4 - core index']
  #allocation1 [shape = 'u32[144,128]{1,0:T(1,128)}', space=vmem, size = 0x12000, scoped, tag = 'internal scratch']
  #allocation2 [shape = 'f32[1,1]{1,0:T(1,128)S(1)}', space=vmem, size = 0x200, scoped, tag = 'scoped memory for parception_branch_forward.1']
  %s0 = inlined_call_operand.hbm [shape: f32[8,512], index: 0, kind: input, shape index: {}]
  %s1 = inlined_call_operand.hbm [shape: f32[8,512], index: 1, kind: input, shape index: {}]
  %s2 = inlined_call_operand.hbm [shape: bf16[512,256], index: 2, kind: input, shape index: {}]
  %s3 = inlined_call_operand.vmem [shape: f32[1,256], index: 3, kind: input, shape index: {}]
  %s4 = inlined_call_operand.hbm [shape: bf16[512,256], index: 4, kind: input, shape index: {}]
  %s5 = inlined_call_operand.vmem [shape: f32[1,256], index: 5, kind: input, shape index: {}]
  %s6 = inlined_call_operand.hbm [shape: bf16[256,256], index: 6, kind: input, shape index: {}]
  %s7 = inlined_call_operand.vmem [shape: f32[1,256], index: 7, kind: input, shape index: {}]
  %s8 = inlined_call_operand.vmem [shape: f32[1,256], index: 8, kind: input, shape index: {}]
  %s9 = inlined_call_operand.hbm [shape: bf16[256,256], index: 9, kind: input, shape index: {}]
  %s10 = inlined_call_operand.vmem [shape: f32[1,256], index: 10, kind: input, shape index: {}]
  %s11 = inlined_call_operand.vmem [shape: f32[1,256], index: 11, kind: input, shape index: {}]
  %s12 = inlined_call_operand.vmem [shape: f32[1,256], index: 12, kind: input, shape index: {}]
  %s13 = inlined_call_operand.vmem [shape: f32[1,256], index: 13, kind: input, shape index: {}]
  %s14 = inlined_call_operand.hbm [shape: bf16[256,256], index: 14, kind: input, shape index: {}]
  %s15 = inlined_call_operand.vmem [shape: f32[1,256], index: 15, kind: input, shape index: {}]
  %s16 = inlined_call_operand.vmem [shape: f32[1,256], index: 16, kind: input, shape index: {}]
  %s17 = inlined_call_operand.<no memory space> [shape: f32[1,1], index: 17, kind: input, shape index: {}]
  %s18 = inlined_call_operand.vmem [shape: f32[8,2], index: 18, kind: output, shape index: {}]
  %s19 = sld [smem:[#allocation0]]
  $region110: #{parception_branch_forward.1} parent=0
    _
  %s21 = ssub.s32 1, %s19
  %s22 = scalar_select 0, %s21, %s19
  %v23 = vstv %s17
  %24 = vst [vmem:[#allocation2] sm:$0x1] %v23
  $region1: #{parception_branch_forward.1} parent=0
    #allocation3 [shape = 'u8[16384]{0}', space=vmem, size = 0x4000, scoped, tag = 'input window, operand 0, single buffered']
    #allocation4 [shape = 's32[1]{0}', space=sflag, size = 0x4, scoped, tag = 'scoped memory for parception_branch_forward.1']
    #allocation5 [shape = 'u8[16384]{0}', space=vmem, size = 0x4000, scoped, tag = 'input window, operand 1, single buffered']
    #allocation6 [shape = 's32[1]{0}', space=sflag, size = 0x4, scoped, tag = 'scoped memory for parception_branch_forward.1']
    #allocation7 [shape = 'u8[262144]{0}', space=vmem, size = 0x40000, scoped, tag = 'input window, operand 2, single buffered']
    #allocation8 [shape = 'u8[262144]{0}', space=vmem, size = 0x40000, scoped, tag = 'input window, operand 4, single buffered']
    #allocation9 [shape = 's32[1]{0}', space=sflag, size = 0x4, scoped, tag = 'scoped memory for parception_branch_forward.1']
    #allocation10 [shape = 'u8[131072]{0}', space=vmem, size = 0x20000, scoped, tag = 'input window, operand 6, single buffered']
    #allocation11 [shape = 'u8[131072]{0}', space=vmem, size = 0x20000, scoped, tag = 'input window, operand 9, single buffered']
    #allocation12 [shape = 's32[1]{0}', space=sflag, size = 0x4, scoped, tag = 'scoped memory for parception_branch_forward.1']
    #allocation13 [shape = 'u8[131072]{0}', space=vmem, size = 0x20000, scoped, tag = 'input window, operand 14, single buffered']
    %25 = vsyncpa [#allocation4], 0
    %26 = vsyncpa [#allocation6], 0
    %27 = vsyncpa [#allocation9], 0
    %28 = vsyncpa [#allocation12], 0
    // Predicated region
    $region2: #{parception_branch_forward.1} parent=1 // pred_check
      _
    $region3: #{parception_branch_forward.1} parent=1 // pred_check_branch
      %30 = sbr.rel (0) target = $region5
    $region4: #{parception_branch_forward.1} parent=1 // pred_region
      %s32 = ssub.s32 512, 512
      %33 = vsyncadd [#allocation4], %s32
      %s35 = sshll.u32 [#allocation3], 4
      %s36 = int_to_ptr.vmem [resolvable:$true] %s35
      %38 = dma.hbm_to_vmem [thread:$0]  %s0, 512, %s36, [#allocation4]
    $region5: #{parception_branch_forward.1} parent=1 // pred_fallthru
      _
    // Predicated region
    $region6: #{parception_branch_forward.1} parent=1 // pred_check
      _
    $region7: #{parception_branch_forward.1} parent=1 // pred_check_branch
      %40 = sbr.rel (0) target = $region9
    $region8: #{parception_branch_forward.1} parent=1 // pred_region
      %s42 = ssub.s32 512, 512
      %43 = vsyncadd [#allocation6], %s42
      %s45 = sshll.u32 [#allocation5], 4
      %s46 = int_to_ptr.vmem [resolvable:$true] %s45
      %48 = dma.hbm_to_vmem [thread:$0]  %s1, 512, %s46, [#allocation6]
    $region9: #{parception_branch_forward.1} parent=1 // pred_fallthru
      _
    // Predicated region
    $region10: #{parception_branch_forward.1} parent=1 // pred_check
      _
    $region11: #{parception_branch_forward.1} parent=1 // pred_check_branch
      %50 = sbr.rel (0) target = $region13
    $region12: #{parception_branch_forward.1} parent=1 // pred_region
      %s52 = ssub.s32 8192, 8192
      %53 = vsyncadd [#allocation6], %s52
      %s54 = sshll.u32 [#allocation7], 4
      %s55 = int_to_ptr.vmem [resolvable:$true] %s54
      %60 = dma.hbm_to_vmem [thread:$0]  %s2, 8192, %s55, [#allocation6], 128, 128, 8
    $region13: #{parception_branch_forward.1} parent=1 // pred_fallthru
      _
    // Predicated region
    $region14: #{parception_branch_forward.1} parent=1 // pred_check
      _
    $region15: #{parception_branch_forward.1} parent=1 // pred_check_branch
      %62 = sbr.rel (0) target = $region17
    $region16: #{parception_branch_forward.1} parent=1 // pred_region
      _
    $region17: #{parception_branch_forward.1} parent=1 // pred_fallthru
      _
    // Predicated region
    $region18: #{parception_branch_forward.1} parent=1 // pred_check
      _
    $region19: #{parception_branch_forward.1} parent=1 // pred_check_branch
      %64 = sbr.rel (0) target = $region21
    $region20: #{parception_branch_forward.1} parent=1 // pred_region
      %s66 = ssub.s32 8192, 8192
      %67 = vsyncadd [#allocation9], %s66
      %s68 = sshll.u32 [#allocation8], 4
      %s69 = int_to_ptr.vmem [resolvable:$true] %s68
      %74 = dma.hbm_to_vmem [thread:$0]  %s4, 8192, %s69, [#allocation9], 128, 128, 8
    $region21: #{parception_branch_forward.1} parent=1 // pred_fallthru
      _
    // Predicated region
    $region22: #{parception_branch_forward.1} parent=1 // pred_check
      _
    $region23: #{parception_branch_forward.1} parent=1 // pred_check_branch
      %76 = sbr.rel (0) target = $region25
    $region24: #{parception_branch_forward.1} parent=1 // pred_region
      _
    $region25: #{parception_branch_forward.1} parent=1 // pred_fallthru
      _
    // Predicated region
    $region26: #{parception_branch_forward.1} parent=1 // pred_check
      _
    $region27: #{parception_branch_forward.1} parent=1 // pred_check_branch
      %78 = sbr.rel (0) target = $region29
    $region28: #{parception_branch_forward.1} parent=1 // pred_region
      %s80 = ssub.s32 4096, 4096
      %81 = vsyncadd [#allocation9], %s80
      %s82 = sshll.u32 [#allocation10], 4
      %s83 = int_to_ptr.vmem [resolvable:$true] %s82
      %88 = dma.hbm_to_vmem [thread:$0]  %s6, 4096, %s83, [#allocation9], 128, 128, 8
    $region29: #{parception_branch_forward.1} parent=1 // pred_fallthru
      _
    // Predicated region
    $region30: #{parception_branch_forward.1} parent=1 // pred_check
      _
    $region31: #{parception_branch_forward.1} parent=1 // pred_check_branch
      %90 = sbr.rel (0) target = $region33
    $region32: #{parception_branch_forward.1} parent=1 // pred_region
      _
    $region33: #{parception_branch_forward.1} parent=1 // pred_fallthru
      _
    // Predicated region
    $region34: #{parception_branch_forward.1} parent=1 // pred_check
      _
    $region35: #{parception_branch_forward.1} parent=1 // pred_check_branch
      %92 = sbr.rel (0) target = $region37
    $region36: #{parception_branch_forward.1} parent=1 // pred_region
      _
    $region37: #{parception_branch_forward.1} parent=1 // pred_fallthru
      _
    // Predicated region
    $region38: #{parception_branch_forward.1} parent=1 // pred_check
      _
    $region39: #{parception_branch_forward.1} parent=1 // pred_check_branch
      %94 = sbr.rel (0) target = $region41
    $region40: #{parception_branch_forward.1} parent=1 // pred_region
      %s96 = ssub.s32 4096, 4096
      %97 = vsyncadd [#allocation12], %s96
      %s98 = sshll.u32 [#allocation11], 4
      %s99 = int_to_ptr.vmem [resolvable:$true] %s98
      %104 = dma.hbm_to_vmem [thread:$0]  %s9, 4096, %s99, [#allocation12], 128, 128, 8
    $region41: #{parception_branch_forward.1} parent=1 // pred_fallthru
      _
    // Predicated region
    $region42: #{parception_branch_forward.1} parent=1 // pred_check
      _
    $region43: #{parception_branch_forward.1} parent=1 // pred_check_branch
      %106 = sbr.rel (0) target = $region45
    $region44: #{parception_branch_forward.1} parent=1 // pred_region
      _
    $region45: #{parception_branch_forward.1} parent=1 // pred_fallthru
      _
    // Predicated region
    $region46: #{parception_branch_forward.1} parent=1 // pred_check
      _
    $region47: #{parception_branch_forward.1} parent=1 // pred_check_branch
      %108 = sbr.rel (0) target = $region49
    $region48: #{parception_branch_forward.1} parent=1 // pred_region
      _
    $region49: #{parception_branch_forward.1} parent=1 // pred_fallthru
      _
    // Predicated region
    $region50: #{parception_branch_forward.1} parent=1 // pred_check
      _
    $region51: #{parception_branch_forward.1} parent=1 // pred_check_branch
      %110 = sbr.rel (0) target = $region53
    $region52: #{parception_branch_forward.1} parent=1 // pred_region
      _
    $region53: #{parception_branch_forward.1} parent=1 // pred_fallthru
      _
    // Predicated region
    $region54: #{parception_branch_forward.1} parent=1 // pred_check
      _
    $region55: #{parception_branch_forward.1} parent=1 // pred_check_branch
      %112 = sbr.rel (0) target = $region57
    $region56: #{parception_branch_forward.1} parent=1 // pred_region
      _
    $region57: #{parception_branch_forward.1} parent=1 // pred_fallthru
      _
    // Predicated region
    $region58: #{parception_branch_forward.1} parent=1 // pred_check
      _
    $region59: #{parception_branch_forward.1} parent=1 // pred_check_branch
      %114 = sbr.rel (0) target = $region61
    $region60: #{parception_branch_forward.1} parent=1 // pred_region
      %s116 = ssub.s32 4096, 4096
      %117 = vsyncadd [#allocation12], %s116
      %s118 = sshll.u32 [#allocation13], 4
      %s119 = int_to_ptr.vmem [resolvable:$true] %s118
      %124 = dma.hbm_to_vmem [thread:$0]  %s14, 4096, %s119, [#allocation12], 128, 128, 8
    $region61: #{parception_branch_forward.1} parent=1 // pred_fallthru
      _
    // Predicated region
    $region62: #{parception_branch_forward.1} parent=1 // pred_check
      _
    $region63: #{parception_branch_forward.1} parent=1 // pred_check_branch
      %126 = sbr.rel (0) target = $region65
    $region64: #{parception_branch_forward.1} parent=1 // pred_region
      _
    $region65: #{parception_branch_forward.1} parent=1 // pred_fallthru
      _
    // Predicated region
    $region66: #{parception_branch_forward.1} parent=1 // pred_check
      _
    $region67: #{parception_branch_forward.1} parent=1 // pred_check_branch
      %128 = sbr.rel (0) target = $region69
    $region68: #{parception_branch_forward.1} parent=1 // pred_region
      _
    $region69: #{parception_branch_forward.1} parent=1 // pred_fallthru
      _
    // Predicated region
    $region70: #{parception_branch_forward.1} parent=1 // pred_check
      _
    $region71: #{parception_branch_forward.1} parent=1 // pred_check_branch
      %130 = sbr.rel (0) target = $region73
    $region72: #{parception_branch_forward.1} parent=1 // pred_region
      _
    $region73: #{parception_branch_forward.1} parent=1 // pred_fallthru
      _
    // Predicated region
    $region74: #{parception_branch_forward.1} parent=1 // pred_check
      _
    $region75: #{parception_branch_forward.1} parent=1 // pred_check_branch
      %132 = sbr.rel (0) target = $region77
    $region76: #{parception_branch_forward.1} parent=1 // pred_region
      %133 = dma.done [#allocation4], 512
    $region77: #{parception_branch_forward.1} parent=1 // pred_fallthru
      _
    // Predicated region
    $region78: #{parception_branch_forward.1} parent=1 // pred_check
      _
    $region79: #{parception_branch_forward.1} parent=1 // pred_check_branch
      %135 = sbr.rel (0) target = $region81
    $region80: #{parception_branch_forward.1} parent=1 // pred_region
      %136 = dma.done [#allocation6], 512
    $region81: #{parception_branch_forward.1} parent=1 // pred_fallthru
      _
    // Predicated region
    $region82: #{parception_branch_forward.1} parent=1 // pred_check
      _
    $region83: #{parception_branch_forward.1} parent=1 // pred_check_branch
      %138 = sbr.rel (0) target = $region85
    $region84: #{parception_branch_forward.1} parent=1 // pred_region
      %139 = dma.done [#allocation6], 8192
    $region85: #{parception_branch_forward.1} parent=1 // pred_fallthru
      _
    // Predicated region
    $region86: #{parception_branch_forward.1} parent=1 // pred_check
      _
    $region87: #{parception_branch_forward.1} parent=1 // pred_check_branch
      %141 = sbr.rel (0) target = $region89
    $region88: #{parception_branch_forward.1} parent=1 // pred_region
      %142 = dma.done [#allocation9], 8192
    $region89: #{parception_branch_forward.1} parent=1 // pred_fallthru
      _
    // Predicated region
    $region90: #{parception_branch_forward.1} parent=1 // pred_check
      _
    $region91: #{parception_branch_forward.1} parent=1 // pred_check_branch
      %144 = sbr.rel (0) target = $region93
    $region92: #{parception_branch_forward.1} parent=1 // pred_region
      %145 = dma.done [#allocation9], 4096
    $region93: #{parception_branch_forward.1} parent=1 // pred_fallthru
      _
    // Predicated region
    $region94: #{parception_branch_forward.1} parent=1 // pred_check
      _
    $region95: #{parception_branch_forward.1} parent=1 // pred_check_branch
      %147 = sbr.rel (0) target = $region97
    $region96: #{parception_branch_forward.1} parent=1 // pred_region
      %148 = dma.done [#allocation12], 4096
    $region97: #{parception_branch_forward.1} parent=1 // pred_fallthru
      _
    // Predicated region
    $region98: #{parception_branch_forward.1} parent=1 // pred_check
      _
    $region99: #{parception_branch_forward.1} parent=1 // pred_check_branch
      %150 = sbr.rel (0) target = $region101
    $region100: #{parception_branch_forward.1} parent=1 // pred_region
      %151 = dma.done [#allocation12], 4096
    $region101: #{parception_branch_forward.1} parent=1 // pred_fallthru
      _
    %v152 = vld [vmem:[#allocation3] sm:$0xff]
    %v153 = vld [vmem:[#allocation3 + $0x8] sm:$0xff]
    %v154 = vld [vmem:[#allocation3 + $0x10] sm:$0xff]
    %v155 = vld [vmem:[#allocation3 + $0x18] sm:$0xff]
    %v156 = vpack.c.bf16 %v152, %v152
    %v157 = vpack.c.bf16 %v153, %v153
    %v158 = vpack.c.bf16 %v154, %v154
    %v159 = vpack.c.bf16 %v155, %v155
    %v160 = vld [vmem:[#allocation5] sm:$0xff]
    %v161 = vld [vmem:[#allocation5 + $0x8] sm:$0xff]
    %v162 = vld [vmem:[#allocation5 + $0x10] sm:$0xff]
    %v163 = vld [vmem:[#allocation5 + $0x18] sm:$0xff]
    %v164 = vpack.c.bf16 %v160, %v160
    %v165 = vpack.c.bf16 %v161, %v161
    %v166 = vpack.c.bf16 %v162, %v162
    %v167 = vpack.c.bf16 %v163, %v163
    %v168 = vld [vmem:[#allocation7] sm:$0xff]
    %v169 = vld [vmem:[#allocation7 + $0x8] sm:$0xff]
    %v170 = vld [vmem:[#allocation7 + $0x10] sm:$0xff]
    %v171 = vld [vmem:[#allocation7 + $0x18] sm:$0xff]
    %v172 = vld [vmem:[#allocation7 + $0x20] sm:$0xff]
    %v173 = vld [vmem:[#allocation7 + $0x28] sm:$0xff]
    %v174 = vld [vmem:[#allocation7 + $0x30] sm:$0xff]
    %v175 = vld [vmem:[#allocation7 + $0x38] sm:$0xff]
    %v176 = vld [vmem:[#allocation7 + $0x40] sm:$0xff]
    %v177 = vld [vmem:[#allocation7 + $0x48] sm:$0xff]
    %v178 = vld [vmem:[#allocation7 + $0x50] sm:$0xff]
    %v179 = vld [vmem:[#allocation7 + $0x58] sm:$0xff]
    %v180 = vld [vmem:[#allocation7 + $0x60] sm:$0xff]
    %v181 = vld [vmem:[#allocation7 + $0x68] sm:$0xff]
    %v182 = vld [vmem:[#allocation7 + $0x70] sm:$0xff]
    %v183 = vld [vmem:[#allocation7 + $0x78] sm:$0xff]
    %v184 = vld [vmem:[#allocation7 + $0x80] sm:$0xff]
    %v185 = vld [vmem:[#allocation7 + $0x88] sm:$0xff]
    %v186 = vld [vmem:[#allocation7 + $0x90] sm:$0xff]
    %v187 = vld [vmem:[#allocation7 + $0x98] sm:$0xff]
    %v188 = vld [vmem:[#allocation7 + $0xa0] sm:$0xff]
    %v189 = vld [vmem:[#allocation7 + $0xa8] sm:$0xff]
    %v190 = vld [vmem:[#allocation7 + $0xb0] sm:$0xff]
    %v191 = vld [vmem:[#allocation7 + $0xb8] sm:$0xff]
    %v192 = vld [vmem:[#allocation7 + $0xc0] sm:$0xff]
    %v193 = vld [vmem:[#allocation7 + $0xc8] sm:$0xff]
    %v194 = vld [vmem:[#allocation7 + $0xd0] sm:$0xff]
    %v195 = vld [vmem:[#allocation7 + $0xd8] sm:$0xff]
    %v196 = vld [vmem:[#allocation7 + $0xe0] sm:$0xff]
    %v197 = vld [vmem:[#allocation7 + $0xe8] sm:$0xff]
    %v198 = vld [vmem:[#allocation7 + $0xf0] sm:$0xff]
    %v199 = vld [vmem:[#allocation7 + $0xf8] sm:$0xff]
    %v200 = vld [vmem:[#allocation7 + $0x100] sm:$0xff]
    %v201 = vld [vmem:[#allocation7 + $0x108] sm:$0xff]
    %v202 = vld [vmem:[#allocation7 + $0x110] sm:$0xff]
    %v203 = vld [vmem:[#allocation7 + $0x118] sm:$0xff]
    %v204 = vld [vmem:[#allocation7 + $0x120] sm:$0xff]
    %v205 = vld [vmem:[#allocation7 + $0x128] sm:$0xff]
    %v206 = vld [vmem:[#allocation7 + $0x130] sm:$0xff]
    %v207 = vld [vmem:[#allocation7 + $0x138] sm:$0xff]
    %v208 = vld [vmem:[#allocation7 + $0x140] sm:$0xff]
    %v209 = vld [vmem:[#allocation7 + $0x148] sm:$0xff]
    %v210 = vld [vmem:[#allocation7 + $0x150] sm:$0xff]
    %v211 = vld [vmem:[#allocation7 + $0x158] sm:$0xff]
    %v212 = vld [vmem:[#allocation7 + $0x160] sm:$0xff]
    %v213 = vld [vmem:[#allocation7 + $0x168] sm:$0xff]
    %v214 = vld [vmem:[#allocation7 + $0x170] sm:$0xff]
    %v215 = vld [vmem:[#allocation7 + $0x178] sm:$0xff]
    %v216 = vld [vmem:[#allocation7 + $0x180] sm:$0xff]
    %v217 = vld [vmem:[#allocation7 + $0x188] sm:$0xff]
    %v218 = vld [vmem:[#allocation7 + $0x190] sm:$0xff]
    %v219 = vld [vmem:[#allocation7 + $0x198] sm:$0xff]
    %v220 = vld [vmem:[#allocation7 + $0x1a0] sm:$0xff]
    %v221 = vld [vmem:[#allocation7 + $0x1a8] sm:$0xff]
    %v222 = vld [vmem:[#allocation7 + $0x1b0] sm:$0xff]
    %v223 = vld [vmem:[#allocation7 + $0x1b8] sm:$0xff]
    %v224 = vld [vmem:[#allocation7 + $0x1c0] sm:$0xff]
    %v225 = vld [vmem:[#allocation7 + $0x1c8] sm:$0xff]
    %v226 = vld [vmem:[#allocation7 + $0x1d0] sm:$0xff]
    %v227 = vld [vmem:[#allocation7 + $0x1d8] sm:$0xff]
    %v228 = vld [vmem:[#allocation7 + $0x1e0] sm:$0xff]
    %v229 = vld [vmem:[#allocation7 + $0x1e8] sm:$0xff]
    %v230 = vld [vmem:[#allocation7 + $0x1f0] sm:$0xff]
    %v231 = vld [vmem:[#allocation7 + $0x1f8] sm:$0xff]
    %v232 = vld [vmem:[%s3] sm:$0x3]
    %v234 = vlaneseq
    %v235 = vshrl.u32 %v234, 7
    %v236 = vsub.s32 0, %v235
    %v237 = vrot.slane %v232, %v236
    %v238 = vlaneseq
    %v239 = vshrl.u32 %v238, 7
    %v240 = vsub.s32 1, %v239
    %v241 = vrot.slane %v232, %v240
    %v308 = vunpack.c.l.b16 %v168
    %v309 = vunpack.c.h.b16 %v168
    %v310 = vunpack.c.l.b16 %v169
    %v311 = vunpack.c.h.b16 %v169
    %v312 = vunpack.c.l.b16 %v170
    %v313 = vunpack.c.h.b16 %v170
    %v314 = vunpack.c.l.b16 %v171
    %v315 = vunpack.c.h.b16 %v171
    %v316 = vunpack.c.l.b16 %v172
    %v317 = vunpack.c.h.b16 %v172
    %v318 = vunpack.c.l.b16 %v173
    %v319 = vunpack.c.h.b16 %v173
    %v320 = vunpack.c.l.b16 %v174
    %v321 = vunpack.c.h.b16 %v174
    %v322 = vunpack.c.l.b16 %v175
    %v323 = vunpack.c.h.b16 %v175
    %v324 = vunpack.c.l.b16 %v176
    %v325 = vunpack.c.h.b16 %v176
    %v326 = vunpack.c.l.b16 %v177
    %v327 = vunpack.c.h.b16 %v177
    %v328 = vunpack.c.l.b16 %v178
    %v329 = vunpack.c.h.b16 %v178
    %v330 = vunpack.c.l.b16 %v179
    %v331 = vunpack.c.h.b16 %v179
    %v332 = vunpack.c.l.b16 %v180
    %v333 = vunpack.c.h.b16 %v180
    %v334 = vunpack.c.l.b16 %v181
    %v335 = vunpack.c.h.b16 %v181
    %v336 = vunpack.c.l.b16 %v182
    %v337 = vunpack.c.h.b16 %v182
    %v338 = vunpack.c.l.b16 %v183
    %v339 = vunpack.c.h.b16 %v183
    %v340 = vunpack.c.l.b16 %v184
    %v341 = vunpack.c.h.b16 %v184
    %v342 = vunpack.c.l.b16 %v185
    %v343 = vunpack.c.h.b16 %v185
    %v344 = vunpack.c.l.b16 %v186
    %v345 = vunpack.c.h.b16 %v186
    %v346 = vunpack.c.l.b16 %v187
    %v347 = vunpack.c.h.b16 %v187
    %v348 = vunpack.c.l.b16 %v188
    %v349 = vunpack.c.h.b16 %v188
    %v350 = vunpack.c.l.b16 %v189
    %v351 = vunpack.c.h.b16 %v189
    %v352 = vunpack.c.l.b16 %v190
    %v353 = vunpack.c.h.b16 %v190
    %v354 = vunpack.c.l.b16 %v191
    %v355 = vunpack.c.h.b16 %v191
    %v356 = vunpack.c.l.b16 %v192
    %v357 = vunpack.c.h.b16 %v192
    %v358 = vunpack.c.l.b16 %v193
    %v359 = vunpack.c.h.b16 %v193
    %v360 = vunpack.c.l.b16 %v194
    %v361 = vunpack.c.h.b16 %v194
    %v362 = vunpack.c.l.b16 %v195
    %v363 = vunpack.c.h.b16 %v195
    %v364 = vunpack.c.l.b16 %v196
    %v365 = vunpack.c.h.b16 %v196
    %v366 = vunpack.c.l.b16 %v197
    %v367 = vunpack.c.h.b16 %v197
    %v368 = vunpack.c.l.b16 %v198
    %v369 = vunpack.c.h.b16 %v198
    %v370 = vunpack.c.l.b16 %v199
    %v371 = vunpack.c.h.b16 %v199
    %v372 = vunpack.c.l.b16 %v200
    %v373 = vunpack.c.h.b16 %v200
    %v374 = vunpack.c.l.b16 %v201
    %v375 = vunpack.c.h.b16 %v201
    %v376 = vunpack.c.l.b16 %v202
    %v377 = vunpack.c.h.b16 %v202
    %v378 = vunpack.c.l.b16 %v203
    %v379 = vunpack.c.h.b16 %v203
    %v380 = vunpack.c.l.b16 %v204
    %v381 = vunpack.c.h.b16 %v204
    %v382 = vunpack.c.l.b16 %v205
    %v383 = vunpack.c.h.b16 %v205
    %v384 = vunpack.c.l.b16 %v206
    %v385 = vunpack.c.h.b16 %v206
    %v386 = vunpack.c.l.b16 %v207
    %v387 = vunpack.c.h.b16 %v207
    %v388 = vunpack.c.l.b16 %v208
    %v389 = vunpack.c.h.b16 %v208
    %v390 = vunpack.c.l.b16 %v209
    %v391 = vunpack.c.h.b16 %v209
    %v392 = vunpack.c.l.b16 %v210
    %v393 = vunpack.c.h.b16 %v210
    %v394 = vunpack.c.l.b16 %v211
    %v395 = vunpack.c.h.b16 %v211
    %v396 = vunpack.c.l.b16 %v212
    %v397 = vunpack.c.h.b16 %v212
    %v398 = vunpack.c.l.b16 %v213
    %v399 = vunpack.c.h.b16 %v213
    %v400 = vunpack.c.l.b16 %v214
    %v401 = vunpack.c.h.b16 %v214
    %v402 = vunpack.c.l.b16 %v215
    %v403 = vunpack.c.h.b16 %v215
    %v404 = vunpack.c.l.b16 %v216
    %v405 = vunpack.c.h.b16 %v216
    %v406 = vunpack.c.l.b16 %v217
    %v407 = vunpack.c.h.b16 %v217
    %v408 = vunpack.c.l.b16 %v218
    %v409 = vunpack.c.h.b16 %v218
    %v410 = vunpack.c.l.b16 %v219
    %v411 = vunpack.c.h.b16 %v219
    %v412 = vunpack.c.l.b16 %v220
    %v413 = vunpack.c.h.b16 %v220
    %v414 = vunpack.c.l.b16 %v221
    %v415 = vunpack.c.h.b16 %v221
    %v416 = vunpack.c.l.b16 %v222
    %v417 = vunpack.c.h.b16 %v222
    %v418 = vunpack.c.l.b16 %v223
    %v419 = vunpack.c.h.b16 %v223
    %v420 = vunpack.c.l.b16 %v224
    %v421 = vunpack.c.h.b16 %v224
    %v422 = vunpack.c.l.b16 %v225
    %v423 = vunpack.c.h.b16 %v225
    %v424 = vunpack.c.l.b16 %v226
    %v425 = vunpack.c.h.b16 %v226
    %v426 = vunpack.c.l.b16 %v227
    %v427 = vunpack.c.h.b16 %v227
    %v428 = vunpack.c.l.b16 %v228
    %v429 = vunpack.c.h.b16 %v228
    %v430 = vunpack.c.l.b16 %v229
    %v431 = vunpack.c.h.b16 %v229
    %v432 = vunpack.c.l.b16 %v230
    %v433 = vunpack.c.h.b16 %v230
    %v434 = vunpack.c.l.b16 %v231
    %v435 = vunpack.c.h.b16 %v231
    %v436 = vpack.c.b16 %v310, %v308
    %v437 = vpack.c.b16 %v311, %v309
    %v438 = vpack.c.b16 %v314, %v312
    %v439 = vpack.c.b16 %v315, %v313
    %v440 = vpack.c.b16 %v318, %v316
    %v441 = vpack.c.b16 %v319, %v317
    %v442 = vpack.c.b16 %v322, %v320
    %v443 = vpack.c.b16 %v323, %v321
    %v444 = vpack.c.b16 %v326, %v324
    %v445 = vpack.c.b16 %v327, %v325
    %v446 = vpack.c.b16 %v330, %v328
    %v447 = vpack.c.b16 %v331, %v329
    %v448 = vpack.c.b16 %v334, %v332
    %v449 = vpack.c.b16 %v335, %v333
    %v450 = vpack.c.b16 %v338, %v336
    %v451 = vpack.c.b16 %v339, %v337
    %v452 = vpack.c.b16 %v342, %v340
    %v453 = vpack.c.b16 %v343, %v341
    %v454 = vpack.c.b16 %v346, %v344
    %v455 = vpack.c.b16 %v347, %v345
    %v456 = vpack.c.b16 %v350, %v348
    %v457 = vpack.c.b16 %v351, %v349
    %v458 = vpack.c.b16 %v354, %v352
    %v459 = vpack.c.b16 %v355, %v353
    %v460 = vpack.c.b16 %v358, %v356
    %v461 = vpack.c.b16 %v359, %v357
    %v462 = vpack.c.b16 %v362, %v360
    %v463 = vpack.c.b16 %v363, %v361
    %v464 = vpack.c.b16 %v366, %v364
    %v465 = vpack.c.b16 %v367, %v365
    %v466 = vpack.c.b16 %v370, %v368
    %v467 = vpack.c.b16 %v371, %v369
    %v468 = vpack.c.b16 %v374, %v372
    %v469 = vpack.c.b16 %v375, %v373
    %v470 = vpack.c.b16 %v378, %v376
    %v471 = vpack.c.b16 %v379, %v377
    %v472 = vpack.c.b16 %v382, %v380
    %v473 = vpack.c.b16 %v383, %v381
    %v474 = vpack.c.b16 %v386, %v384
    %v475 = vpack.c.b16 %v387, %v385
    %v476 = vpack.c.b16 %v390, %v388
    %v477 = vpack.c.b16 %v391, %v389
    %v478 = vpack.c.b16 %v394, %v392
    %v479 = vpack.c.b16 %v395, %v393
    %v480 = vpack.c.b16 %v398, %v396
    %v481 = vpack.c.b16 %v399, %v397
    %v482 = vpack.c.b16 %v402, %v400
    %v483 = vpack.c.b16 %v403, %v401
    %v484 = vpack.c.b16 %v406, %v404
    %v485 = vpack.c.b16 %v407, %v405
    %v486 = vpack.c.b16 %v410, %v408
    %v487 = vpack.c.b16 %v411, %v409
    %v488 = vpack.c.b16 %v414, %v412
    %v489 = vpack.c.b16 %v415, %v413
    %v490 = vpack.c.b16 %v418, %v416
    %v491 = vpack.c.b16 %v419, %v417
    %v492 = vpack.c.b16 %v422, %v420
    %v493 = vpack.c.b16 %v423, %v421
    %v494 = vpack.c.b16 %v426, %v424
    %v495 = vpack.c.b16 %v427, %v425
    %v496 = vpack.c.b16 %v430, %v428
    %v497 = vpack.c.b16 %v431, %v429
    %v498 = vpack.c.b16 %v434, %v432
    %v499 = vpack.c.b16 %v435, %v433
    %564 = vmatprep.subr.bf16.mxu0 %v451
    %565 = vmatpush1.bf16.msra.mxu0 %v450
    %566 = vmatprep.subr.bf16.mxu0 %v449
    %567 = vmatpush1.bf16.msra.mxu0 %v448
    %568 = vmatprep.subr.bf16.mxu0 %v447
    %569 = vmatpush1.bf16.msra.mxu0 %v446
    %570 = vmatprep.subr.bf16.mxu0 %v445
    %571 = vmatpush1.bf16.msra.mxu0 %v444
    %572 = vmatprep.subr.bf16.mxu0 %v443
    %573 = vmatpush1.bf16.msra.mxu0 %v442
    %574 = vmatprep.subr.bf16.mxu0 %v441
    %575 = vmatpush1.bf16.msra.mxu0 %v440
    %576 = vmatprep.subr.bf16.mxu0 %v439
    %577 = vmatpush1.bf16.msra.mxu0 %v438
    %578 = vmatprep.subr.bf16.mxu0 %v437
    %579 = vmatpush1.bf16.msra.mxu0 %v436
    %580 = vmatprep.subr.bf16.mxu0 %v467
    %581 = vmatpush2.bf16.msra.mxu0 %v466
    %582 = vmatprep.subr.bf16.mxu0 %v465
    %583 = vmatpush2.bf16.msra.mxu0 %v464
    %584 = vmatprep.subr.bf16.mxu0 %v463
    %585 = vmatpush2.bf16.msra.mxu0 %v462
    %586 = vmatprep.subr.bf16.mxu0 %v461
    %587 = vmatpush2.bf16.msra.mxu0 %v460
    %588 = vmatprep.subr.bf16.mxu0 %v459
    %589 = vmatpush2.bf16.msra.mxu0 %v458
    %590 = vmatprep.subr.bf16.mxu0 %v457
    %591 = vmatpush2.bf16.msra.mxu0 %v456
    %592 = vmatprep.subr.bf16.mxu0 %v455
    %593 = vmatpush2.bf16.msra.mxu0 %v454
    %594 = vmatprep.subr.bf16.mxu0 %v453
    %595 = vmatpush2.bf16.msra.mxu0 %v452
    %596 = vmatprep.mubr.bf16.mxu0 %v157
    %597 = vmatmul.mubr.bf16.gmra.mxu0 %v156
    %v598 = vpop.f32.mrf.mxu0
    %v599 = vadd.f32 %v237, %v598
    %v600 = vpop.f32.mrf.mxu0
    %v601 = vadd.f32 %v241, %v600
    %v602 = vpop.f32.mrf.mxu0
    %v603 = vpop.f32.mrf.mxu0
    %604 = vdwg.mxu0
    %605 = vmatprep.subr.bf16.mxu0 %v483
    %606 = vmatpush1.bf16.msra.mxu0 %v482
    %607 = vmatprep.subr.bf16.mxu0 %v481
    %608 = vmatpush1.bf16.msra.mxu0 %v480
    %609 = vmatprep.subr.bf16.mxu0 %v479
    %610 = vmatpush1.bf16.msra.mxu0 %v478
    %611 = vmatprep.subr.bf16.mxu0 %v477
    %612 = vmatpush1.bf16.msra.mxu0 %v476
    %613 = vmatprep.subr.bf16.mxu0 %v475
    %614 = vmatpush1.bf16.msra.mxu0 %v474
    %615 = vmatprep.subr.bf16.mxu0 %v473
    %616 = vmatpush1.bf16.msra.mxu0 %v472
    %617 = vmatprep.subr.bf16.mxu0 %v471
    %618 = vmatpush1.bf16.msra.mxu0 %v470
    %619 = vmatprep.subr.bf16.mxu0 %v469
    %620 = vmatpush1.bf16.msra.mxu0 %v468
    %621 = vmatprep.subr.bf16.mxu0 %v499
    %622 = vmatpush2.bf16.msra.mxu0 %v498
    %623 = vmatprep.subr.bf16.mxu0 %v497
    %624 = vmatpush2.bf16.msra.mxu0 %v496
    %625 = vmatprep.subr.bf16.mxu0 %v495
    %626 = vmatpush2.bf16.msra.mxu0 %v494
    %627 = vmatprep.subr.bf16.mxu0 %v493
    %628 = vmatpush2.bf16.msra.mxu0 %v492
    %629 = vmatprep.subr.bf16.mxu0 %v491
    %630 = vmatpush2.bf16.msra.mxu0 %v490
    %631 = vmatprep.subr.bf16.mxu0 %v489
    %632 = vmatpush2.bf16.msra.mxu0 %v488
    %633 = vmatprep.subr.bf16.mxu0 %v487
    %634 = vmatpush2.bf16.msra.mxu0 %v486
    %635 = vmatprep.subr.bf16.mxu0 %v485
    %636 = vmatpush2.bf16.msra.mxu0 %v484
    %637 = vmatprep.mubr.bf16.mxu0 %v159
    %638 = vmatmul.mubr.bf16.gmra.mxu0 %v158
    %v639 = vpop.f32.mrf.mxu0
    %v640 = vadd.f32 %v599, %v639
    %v641 = vpop.f32.mrf.mxu0
    %v642 = vadd.f32 %v601, %v641
    %v643 = vpop.f32.mrf.mxu0
    %v644 = vpop.f32.mrf.mxu0
    %645 = vdwg.mxu0
    %v646 = vld [vmem:[#allocation8] sm:$0xff]
    %v647 = vld [vmem:[#allocation8 + $0x8] sm:$0xff]
    %v648 = vld [vmem:[#allocation8 + $0x10] sm:$0xff]
    %v649 = vld [vmem:[#allocation8 + $0x18] sm:$0xff]
    %v650 = vld [vmem:[#allocation8 + $0x20] sm:$0xff]
    %v651 = vld [vmem:[#allocation8 + $0x28] sm:$0xff]
    %v652 = vld [vmem:[#allocation8 + $0x30] sm:$0xff]
    %v653 = vld [vmem:[#allocation8 + $0x38] sm:$0xff]
    %v654 = vld [vmem:[#allocation8 + $0x40] sm:$0xff]
    %v655 = vld [vmem:[#allocation8 + $0x48] sm:$0xff]
    %v656 = vld [vmem:[#allocation8 + $0x50] sm:$0xff]
    %v657 = vld [vmem:[#allocation8 + $0x58] sm:$0xff]
    %v658 = vld [vmem:[#allocation8 + $0x60] sm:$0xff]
    %v659 = vld [vmem:[#allocation8 + $0x68] sm:$0xff]
    %v660 = vld [vmem:[#allocation8 + $0x70] sm:$0xff]
    %v661 = vld [vmem:[#allocation8 + $0x78] sm:$0xff]
    %v662 = vld [vmem:[#allocation8 + $0x80] sm:$0xff]
    %v663 = vld [vmem:[#allocation8 + $0x88] sm:$0xff]
    %v664 = vld [vmem:[#allocation8 + $0x90] sm:$0xff]
    %v665 = vld [vmem:[#allocation8 + $0x98] sm:$0xff]
    %v666 = vld [vmem:[#allocation8 + $0xa0] sm:$0xff]
    %v667 = vld [vmem:[#allocation8 + $0xa8] sm:$0xff]
    %v668 = vld [vmem:[#allocation8 + $0xb0] sm:$0xff]
    %v669 = vld [vmem:[#allocation8 + $0xb8] sm:$0xff]
    %v670 = vld [vmem:[#allocation8 + $0xc0] sm:$0xff]
    %v671 = vld [vmem:[#allocation8 + $0xc8] sm:$0xff]
    %v672 = vld [vmem:[#allocation8 + $0xd0] sm:$0xff]
    %v673 = vld [vmem:[#allocation8 + $0xd8] sm:$0xff]
    %v674 = vld [vmem:[#allocation8 + $0xe0] sm:$0xff]
    %v675 = vld [vmem:[#allocation8 + $0xe8] sm:$0xff]
    %v676 = vld [vmem:[#allocation8 + $0xf0] sm:$0xff]
    %v677 = vld [vmem:[#allocation8 + $0xf8] sm:$0xff]
    %v678 = vld [vmem:[#allocation8 + $0x100] sm:$0xff]
    %v679 = vld [vmem:[#allocation8 + $0x108] sm:$0xff]
    %v680 = vld [vmem:[#allocation8 + $0x110] sm:$0xff]
    %v681 = vld [vmem:[#allocation8 + $0x118] sm:$0xff]
    %v682 = vld [vmem:[#allocation8 + $0x120] sm:$0xff]
    %v683 = vld [vmem:[#allocation8 + $0x128] sm:$0xff]
    %v684 = vld [vmem:[#allocation8 + $0x130] sm:$0xff]
    %v685 = vld [vmem:[#allocation8 + $0x138] sm:$0xff]
    %v686 = vld [vmem:[#allocation8 + $0x140] sm:$0xff]
    %v687 = vld [vmem:[#allocation8 + $0x148] sm:$0xff]
    %v688 = vld [vmem:[#allocation8 + $0x150] sm:$0xff]
    %v689 = vld [vmem:[#allocation8 + $0x158] sm:$0xff]
    %v690 = vld [vmem:[#allocation8 + $0x160] sm:$0xff]
    %v691 = vld [vmem:[#allocation8 + $0x168] sm:$0xff]
    %v692 = vld [vmem:[#allocation8 + $0x170] sm:$0xff]
    %v693 = vld [vmem:[#allocation8 + $0x178] sm:$0xff]
    %v694 = vld [vmem:[#allocation8 + $0x180] sm:$0xff]
    %v695 = vld [vmem:[#allocation8 + $0x188] sm:$0xff]
    %v696 = vld [vmem:[#allocation8 + $0x190] sm:$0xff]
    %v697 = vld [vmem:[#allocation8 + $0x198] sm:$0xff]
    %v698 = vld [vmem:[#allocation8 + $0x1a0] sm:$0xff]
    %v699 = vld [vmem:[#allocation8 + $0x1a8] sm:$0xff]
    %v700 = vld [vmem:[#allocation8 + $0x1b0] sm:$0xff]
    %v701 = vld [vmem:[#allocation8 + $0x1b8] sm:$0xff]
    %v702 = vld [vmem:[#allocation8 + $0x1c0] sm:$0xff]
    %v703 = vld [vmem:[#allocation8 + $0x1c8] sm:$0xff]
    %v704 = vld [vmem:[#allocation8 + $0x1d0] sm:$0xff]
    %v705 = vld [vmem:[#allocation8 + $0x1d8] sm:$0xff]
    %v706 = vld [vmem:[#allocation8 + $0x1e0] sm:$0xff]
    %v707 = vld [vmem:[#allocation8 + $0x1e8] sm:$0xff]
    %v708 = vld [vmem:[#allocation8 + $0x1f0] sm:$0xff]
    %v709 = vld [vmem:[#allocation8 + $0x1f8] sm:$0xff]
    %v710 = vld [vmem:[%s5] sm:$0x3]
    %v712 = vlaneseq
    %v713 = vshrl.u32 %v712, 7
    %v714 = vsub.s32 0, %v713
    %v715 = vrot.slane %v710, %v714
    %v716 = vlaneseq
    %v717 = vshrl.u32 %v716, 7
    %v718 = vsub.s32 1, %v717
    %v719 = vrot.slane %v710, %v718
    %v786 = vunpack.c.l.b16 %v646
    %v787 = vunpack.c.h.b16 %v646
    %v788 = vunpack.c.l.b16 %v647
    %v789 = vunpack.c.h.b16 %v647
    %v790 = vunpack.c.l.b16 %v648
    %v791 = vunpack.c.h.b16 %v648
    %v792 = vunpack.c.l.b16 %v649
    %v793 = vunpack.c.h.b16 %v649
    %v794 = vunpack.c.l.b16 %v650
    %v795 = vunpack.c.h.b16 %v650
    %v796 = vunpack.c.l.b16 %v651
    %v797 = vunpack.c.h.b16 %v651
    %v798 = vunpack.c.l.b16 %v652
    %v799 = vunpack.c.h.b16 %v652
    %v800 = vunpack.c.l.b16 %v653
    %v801 = vunpack.c.h.b16 %v653
    %v802 = vunpack.c.l.b16 %v654
    %v803 = vunpack.c.h.b16 %v654
    %v804 = vunpack.c.l.b16 %v655
    %v805 = vunpack.c.h.b16 %v655
    %v806 = vunpack.c.l.b16 %v656
    %v807 = vunpack.c.h.b16 %v656
    %v808 = vunpack.c.l.b16 %v657
    %v809 = vunpack.c.h.b16 %v657
    %v810 = vunpack.c.l.b16 %v658
    %v811 = vunpack.c.h.b16 %v658
    %v812 = vunpack.c.l.b16 %v659
    %v813 = vunpack.c.h.b16 %v659
    %v814 = vunpack.c.l.b16 %v660
    %v815 = vunpack.c.h.b16 %v660
    %v816 = vunpack.c.l.b16 %v661
    %v817 = vunpack.c.h.b16 %v661
    %v818 = vunpack.c.l.b16 %v662
    %v819 = vunpack.c.h.b16 %v662
    %v820 = vunpack.c.l.b16 %v663
    %v821 = vunpack.c.h.b16 %v663
    %v822 = vunpack.c.l.b16 %v664
    %v823 = vunpack.c.h.b16 %v664
    %v824 = vunpack.c.l.b16 %v665
    %v825 = vunpack.c.h.b16 %v665
    %v826 = vunpack.c.l.b16 %v666
    %v827 = vunpack.c.h.b16 %v666
    %v828 = vunpack.c.l.b16 %v667
    %v829 = vunpack.c.h.b16 %v667
    %v830 = vunpack.c.l.b16 %v668
    %v831 = vunpack.c.h.b16 %v668
    %v832 = vunpack.c.l.b16 %v669
    %v833 = vunpack.c.h.b16 %v669
    %v834 = vunpack.c.l.b16 %v670
    %v835 = vunpack.c.h.b16 %v670
    %v836 = vunpack.c.l.b16 %v671
    %v837 = vunpack.c.h.b16 %v671
    %v838 = vunpack.c.l.b16 %v672
    %v839 = vunpack.c.h.b16 %v672
    %v840 = vunpack.c.l.b16 %v673
    %v841 = vunpack.c.h.b16 %v673
    %v842 = vunpack.c.l.b16 %v674
    %v843 = vunpack.c.h.b16 %v674
    %v844 = vunpack.c.l.b16 %v675
    %v845 = vunpack.c.h.b16 %v675
    %v846 = vunpack.c.l.b16 %v676
    %v847 = vunpack.c.h.b16 %v676
    %v848 = vunpack.c.l.b16 %v677
    %v849 = vunpack.c.h.b16 %v677
    %v850 = vunpack.c.l.b16 %v678
    %v851 = vunpack.c.h.b16 %v678
    %v852 = vunpack.c.l.b16 %v679
    %v853 = vunpack.c.h.b16 %v679
    %v854 = vunpack.c.l.b16 %v680
    %v855 = vunpack.c.h.b16 %v680
    %v856 = vunpack.c.l.b16 %v681
    %v857 = vunpack.c.h.b16 %v681
    %v858 = vunpack.c.l.b16 %v682
    %v859 = vunpack.c.h.b16 %v682
    %v860 = vunpack.c.l.b16 %v683
    %v861 = vunpack.c.h.b16 %v683
    %v862 = vunpack.c.l.b16 %v684
    %v863 = vunpack.c.h.b16 %v684
    %v864 = vunpack.c.l.b16 %v685
    %v865 = vunpack.c.h.b16 %v685
    %v866 = vunpack.c.l.b16 %v686
    %v867 = vunpack.c.h.b16 %v686
    %v868 = vunpack.c.l.b16 %v687
    %v869 = vunpack.c.h.b16 %v687
    %v870 = vunpack.c.l.b16 %v688
    %v871 = vunpack.c.h.b16 %v688
    %v872 = vunpack.c.l.b16 %v689
    %v873 = vunpack.c.h.b16 %v689
    %v874 = vunpack.c.l.b16 %v690
    %v875 = vunpack.c.h.b16 %v690
    %v876 = vunpack.c.l.b16 %v691
    %v877 = vunpack.c.h.b16 %v691
    %v878 = vunpack.c.l.b16 %v692
    %v879 = vunpack.c.h.b16 %v692
    %v880 = vunpack.c.l.b16 %v693
    %v881 = vunpack.c.h.b16 %v693
    %v882 = vunpack.c.l.b16 %v694
    %v883 = vunpack.c.h.b16 %v694
    %v884 = vunpack.c.l.b16 %v695
    %v885 = vunpack.c.h.b16 %v695
    %v886 = vunpack.c.l.b16 %v696
    %v887 = vunpack.c.h.b16 %v696
    %v888 = vunpack.c.l.b16 %v697
    %v889 = vunpack.c.h.b16 %v697
    %v890 = vunpack.c.l.b16 %v698
    %v891 = vunpack.c.h.b16 %v698
    %v892 = vunpack.c.l.b16 %v699
    %v893 = vunpack.c.h.b16 %v699
    %v894 = vunpack.c.l.b16 %v700
    %v895 = vunpack.c.h.b16 %v700
    %v896 = vunpack.c.l.b16 %v701
    %v897 = vunpack.c.h.b16 %v701
    %v898 = vunpack.c.l.b16 %v702
    %v899 = vunpack.c.h.b16 %v702
    %v900 = vunpack.c.l.b16 %v703
    %v901 = vunpack.c.h.b16 %v703
    %v902 = vunpack.c.l.b16 %v704
    %v903 = vunpack.c.h.b16 %v704
    %v904 = vunpack.c.l.b16 %v705
    %v905 = vunpack.c.h.b16 %v705
    %v906 = vunpack.c.l.b16 %v706
    %v907 = vunpack.c.h.b16 %v706
    %v908 = vunpack.c.l.b16 %v707
    %v909 = vunpack.c.h.b16 %v707
    %v910 = vunpack.c.l.b16 %v708
    %v911 = vunpack.c.h.b16 %v708
    %v912 = vunpack.c.l.b16 %v709
    %v913 = vunpack.c.h.b16 %v709
    %v914 = vpack.c.b16 %v788, %v786
    %v915 = vpack.c.b16 %v789, %v787
    %v916 = vpack.c.b16 %v792, %v790
    %v917 = vpack.c.b16 %v793, %v791
    %v918 = vpack.c.b16 %v796, %v794
    %v919 = vpack.c.b16 %v797, %v795
    %v920 = vpack.c.b16 %v800, %v798
    %v921 = vpack.c.b16 %v801, %v799
    %v922 = vpack.c.b16 %v804, %v802
    %v923 = vpack.c.b16 %v805, %v803
    %v924 = vpack.c.b16 %v808, %v806
    %v925 = vpack.c.b16 %v809, %v807
    %v926 = vpack.c.b16 %v812, %v810
    %v927 = vpack.c.b16 %v813, %v811
    %v928 = vpack.c.b16 %v816, %v814
    %v929 = vpack.c.b16 %v817, %v815
    %v930 = vpack.c.b16 %v820, %v818
    %v931 = vpack.c.b16 %v821, %v819
    %v932 = vpack.c.b16 %v824, %v822
    %v933 = vpack.c.b16 %v825, %v823
    %v934 = vpack.c.b16 %v828, %v826
    %v935 = vpack.c.b16 %v829, %v827
    %v936 = vpack.c.b16 %v832, %v830
    %v937 = vpack.c.b16 %v833, %v831
    %v938 = vpack.c.b16 %v836, %v834
    %v939 = vpack.c.b16 %v837, %v835
    %v940 = vpack.c.b16 %v840, %v838
    %v941 = vpack.c.b16 %v841, %v839
    %v942 = vpack.c.b16 %v844, %v842
    %v943 = vpack.c.b16 %v845, %v843
    %v944 = vpack.c.b16 %v848, %v846
    %v945 = vpack.c.b16 %v849, %v847
    %v946 = vpack.c.b16 %v852, %v850
    %v947 = vpack.c.b16 %v853, %v851
    %v948 = vpack.c.b16 %v856, %v854
    %v949 = vpack.c.b16 %v857, %v855
    %v950 = vpack.c.b16 %v860, %v858
    %v951 = vpack.c.b16 %v861, %v859
    %v952 = vpack.c.b16 %v864, %v862
    %v953 = vpack.c.b16 %v865, %v863
    %v954 = vpack.c.b16 %v868, %v866
    %v955 = vpack.c.b16 %v869, %v867
    %v956 = vpack.c.b16 %v872, %v870
    %v957 = vpack.c.b16 %v873, %v871
    %v958 = vpack.c.b16 %v876, %v874
    %v959 = vpack.c.b16 %v877, %v875
    %v960 = vpack.c.b16 %v880, %v878
    %v961 = vpack.c.b16 %v881, %v879
    %v962 = vpack.c.b16 %v884, %v882
    %v963 = vpack.c.b16 %v885, %v883
    %v964 = vpack.c.b16 %v888, %v886
    %v965 = vpack.c.b16 %v889, %v887
    %v966 = vpack.c.b16 %v892, %v890
    %v967 = vpack.c.b16 %v893, %v891
    %v968 = vpack.c.b16 %v896, %v894
    %v969 = vpack.c.b16 %v897, %v895
    %v970 = vpack.c.b16 %v900, %v898
    %v971 = vpack.c.b16 %v901, %v899
    %v972 = vpack.c.b16 %v904, %v902
    %v973 = vpack.c.b16 %v905, %v903
    %v974 = vpack.c.b16 %v908, %v906
    %v975 = vpack.c.b16 %v909, %v907
    %v976 = vpack.c.b16 %v912, %v910
    %v977 = vpack.c.b16 %v913, %v911
    %1042 = vmatprep.subr.bf16.mxu0 %v929
    %1043 = vmatpush1.bf16.msra.mxu0 %v928
    %1044 = vmatprep.subr.bf16.mxu0 %v927
    %1045 = vmatpush1.bf16.msra.mxu0 %v926
    %1046 = vmatprep.subr.bf16.mxu0 %v925
    %1047 = vmatpush1.bf16.msra.mxu0 %v924
    %1048 = vmatprep.subr.bf16.mxu0 %v923
    %1049 = vmatpush1.bf16.msra.mxu0 %v922
    %1050 = vmatprep.subr.bf16.mxu0 %v921
    %1051 = vmatpush1.bf16.msra.mxu0 %v920
    %1052 = vmatprep.subr.bf16.mxu0 %v919
    %1053 = vmatpush1.bf16.msra.mxu0 %v918
    %1054 = vmatprep.subr.bf16.mxu0 %v917
    %1055 = vmatpush1.bf16.msra.mxu0 %v916
    %1056 = vmatprep.subr.bf16.mxu0 %v915
    %1057 = vmatpush1.bf16.msra.mxu0 %v914
    %1058 = vmatprep.subr.bf16.mxu0 %v945
    %1059 = vmatpush2.bf16.msra.mxu0 %v944
    %1060 = vmatprep.subr.bf16.mxu0 %v943
    %1061 = vmatpush2.bf16.msra.mxu0 %v942
    %1062 = vmatprep.subr.bf16.mxu0 %v941
    %1063 = vmatpush2.bf16.msra.mxu0 %v940
    %1064 = vmatprep.subr.bf16.mxu0 %v939
    %1065 = vmatpush2.bf16.msra.mxu0 %v938
    %1066 = vmatprep.subr.bf16.mxu0 %v937
    %1067 = vmatpush2.bf16.msra.mxu0 %v936
    %1068 = vmatprep.subr.bf16.mxu0 %v935
    %1069 = vmatpush2.bf16.msra.mxu0 %v934
    %1070 = vmatprep.subr.bf16.mxu0 %v933
    %1071 = vmatpush2.bf16.msra.mxu0 %v932
    %1072 = vmatprep.subr.bf16.mxu0 %v931
    %1073 = vmatpush2.bf16.msra.mxu0 %v930
    %1074 = vmatprep.mubr.bf16.mxu0 %v165
    %1075 = vmatmul.mubr.bf16.gmra.mxu0 %v164
    %v1076 = vpop.f32.mrf.mxu0
    %v1077 = vadd.f32 %v715, %v1076
    %v1078 = vpop.f32.mrf.mxu0
    %v1079 = vadd.f32 %v719, %v1078
    %v1080 = vpop.f32.mrf.mxu0
    %v1081 = vpop.f32.mrf.mxu0
    %1082 = vdwg.mxu0
    %1083 = vmatprep.subr.bf16.mxu0 %v961
    %1084 = vmatpush1.bf16.msra.mxu0 %v960
    %1085 = vmatprep.subr.bf16.mxu0 %v959
    %1086 = vmatpush1.bf16.msra.mxu0 %v958
    %1087 = vmatprep.subr.bf16.mxu0 %v957
    %1088 = vmatpush1.bf16.msra.mxu0 %v956
    %1089 = vmatprep.subr.bf16.mxu0 %v955
    %1090 = vmatpush1.bf16.msra.mxu0 %v954
    %1091 = vmatprep.subr.bf16.mxu0 %v953
    %1092 = vmatpush1.bf16.msra.mxu0 %v952
    %1093 = vmatprep.subr.bf16.mxu0 %v951
    %1094 = vmatpush1.bf16.msra.mxu0 %v950
    %1095 = vmatprep.subr.bf16.mxu0 %v949
    %1096 = vmatpush1.bf16.msra.mxu0 %v948
    %1097 = vmatprep.subr.bf16.mxu0 %v947
    %1098 = vmatpush1.bf16.msra.mxu0 %v946
    %1099 = vmatprep.subr.bf16.mxu0 %v977
    %1100 = vmatpush2.bf16.msra.mxu0 %v976
    %1101 = vmatprep.subr.bf16.mxu0 %v975
    %1102 = vmatpush2.bf16.msra.mxu0 %v974
    %1103 = vmatprep.subr.bf16.mxu0 %v973
    %1104 = vmatpush2.bf16.msra.mxu0 %v972
    %1105 = vmatprep.subr.bf16.mxu0 %v971
    %1106 = vmatpush2.bf16.msra.mxu0 %v970
    %1107 = vmatprep.subr.bf16.mxu0 %v969
    %1108 = vmatpush2.bf16.msra.mxu0 %v968
    %1109 = vmatprep.subr.bf16.mxu0 %v967
    %1110 = vmatpush2.bf16.msra.mxu0 %v966
    %1111 = vmatprep.subr.bf16.mxu0 %v965
    %1112 = vmatpush2.bf16.msra.mxu0 %v964
    %1113 = vmatprep.subr.bf16.mxu0 %v963
    %1114 = vmatpush2.bf16.msra.mxu0 %v962
    %1115 = vmatprep.mubr.bf16.mxu0 %v167
    %1116 = vmatmul.mubr.bf16.gmra.mxu0 %v166
    %v1117 = vpop.f32.mrf.mxu0
    %v1118 = vadd.f32 %v1077, %v1117
    %v1119 = vpop.f32.mrf.mxu0
    %v1120 = vadd.f32 %v1079, %v1119
    %v1121 = vpop.f32.mrf.mxu0
    %v1122 = vpop.f32.mrf.mxu0
    %1123 = vdwg.mxu0
    %v1124 = vpack.c.bf16 %v640, %v640
    %v1125 = vpack.c.bf16 %v642, %v642
    %v1126 = vld [vmem:[#allocation10] sm:$0xff]
    %v1127 = vld [vmem:[#allocation10 + $0x8] sm:$0xff]
    %v1128 = vld [vmem:[#allocation10 + $0x10] sm:$0xff]
    %v1129 = vld [vmem:[#allocation10 + $0x18] sm:$0xff]
    %v1130 = vld [vmem:[#allocation10 + $0x20] sm:$0xff]
    %v1131 = vld [vmem:[#allocation10 + $0x28] sm:$0xff]
    %v1132 = vld [vmem:[#allocation10 + $0x30] sm:$0xff]
    %v1133 = vld [vmem:[#allocation10 + $0x38] sm:$0xff]
    %v1134 = vld [vmem:[#allocation10 + $0x40] sm:$0xff]
    %v1135 = vld [vmem:[#allocation10 + $0x48] sm:$0xff]
    %v1136 = vld [vmem:[#allocation10 + $0x50] sm:$0xff]
    %v1137 = vld [vmem:[#allocation10 + $0x58] sm:$0xff]
    %v1138 = vld [vmem:[#allocation10 + $0x60] sm:$0xff]
    %v1139 = vld [vmem:[#allocation10 + $0x68] sm:$0xff]
    %v1140 = vld [vmem:[#allocation10 + $0x70] sm:$0xff]
    %v1141 = vld [vmem:[#allocation10 + $0x78] sm:$0xff]
    %v1142 = vld [vmem:[#allocation10 + $0x80] sm:$0xff]
    %v1143 = vld [vmem:[#allocation10 + $0x88] sm:$0xff]
    %v1144 = vld [vmem:[#allocation10 + $0x90] sm:$0xff]
    %v1145 = vld [vmem:[#allocation10 + $0x98] sm:$0xff]
    %v1146 = vld [vmem:[#allocation10 + $0xa0] sm:$0xff]
    %v1147 = vld [vmem:[#allocation10 + $0xa8] sm:$0xff]
    %v1148 = vld [vmem:[#allocation10 + $0xb0] sm:$0xff]
    %v1149 = vld [vmem:[#allocation10 + $0xb8] sm:$0xff]
    %v1150 = vld [vmem:[#allocation10 + $0xc0] sm:$0xff]
    %v1151 = vld [vmem:[#allocation10 + $0xc8] sm:$0xff]
    %v1152 = vld [vmem:[#allocation10 + $0xd0] sm:$0xff]
    %v1153 = vld [vmem:[#allocation10 + $0xd8] sm:$0xff]
    %v1154 = vld [vmem:[#allocation10 + $0xe0] sm:$0xff]
    %v1155 = vld [vmem:[#allocation10 + $0xe8] sm:$0xff]
    %v1156 = vld [vmem:[#allocation10 + $0xf0] sm:$0xff]
    %v1157 = vld [vmem:[#allocation10 + $0xf8] sm:$0xff]
    %v1158 = vld [vmem:[%s7] sm:$0x3]
    %v1160 = vlaneseq
    %v1161 = vshrl.u32 %v1160, 7
    %v1162 = vsub.s32 0, %v1161
    %v1163 = vrot.slane %v1158, %v1162
    %v1164 = vlaneseq
    %v1165 = vshrl.u32 %v1164, 7
    %v1166 = vsub.s32 1, %v1165
    %v1167 = vrot.slane %v1158, %v1166
    %v1202 = vunpack.c.l.b16 %v1126
    %v1203 = vunpack.c.h.b16 %v1126
    %v1204 = vunpack.c.l.b16 %v1127
    %v1205 = vunpack.c.h.b16 %v1127
    %v1206 = vunpack.c.l.b16 %v1128
    %v1207 = vunpack.c.h.b16 %v1128
    %v1208 = vunpack.c.l.b16 %v1129
    %v1209 = vunpack.c.h.b16 %v1129
    %v1210 = vunpack.c.l.b16 %v1130
    %v1211 = vunpack.c.h.b16 %v1130
    %v1212 = vunpack.c.l.b16 %v1131
    %v1213 = vunpack.c.h.b16 %v1131
    %v1214 = vunpack.c.l.b16 %v1132
    %v1215 = vunpack.c.h.b16 %v1132
    %v1216 = vunpack.c.l.b16 %v1133
    %v1217 = vunpack.c.h.b16 %v1133
    %v1218 = vunpack.c.l.b16 %v1134
    %v1219 = vunpack.c.h.b16 %v1134
    %v1220 = vunpack.c.l.b16 %v1135
    %v1221 = vunpack.c.h.b16 %v1135
    %v1222 = vunpack.c.l.b16 %v1136
    %v1223 = vunpack.c.h.b16 %v1136
    %v1224 = vunpack.c.l.b16 %v1137
    %v1225 = vunpack.c.h.b16 %v1137
    %v1226 = vunpack.c.l.b16 %v1138
    %v1227 = vunpack.c.h.b16 %v1138
    %v1228 = vunpack.c.l.b16 %v1139
    %v1229 = vunpack.c.h.b16 %v1139
    %v1230 = vunpack.c.l.b16 %v1140
    %v1231 = vunpack.c.h.b16 %v1140
    %v1232 = vunpack.c.l.b16 %v1141
    %v1233 = vunpack.c.h.b16 %v1141
    %v1234 = vunpack.c.l.b16 %v1142
    %v1235 = vunpack.c.h.b16 %v1142
    %v1236 = vunpack.c.l.b16 %v1143
    %v1237 = vunpack.c.h.b16 %v1143
    %v1238 = vunpack.c.l.b16 %v1144
    %v1239 = vunpack.c.h.b16 %v1144
    %v1240 = vunpack.c.l.b16 %v1145
    %v1241 = vunpack.c.h.b16 %v1145
    %v1242 = vunpack.c.l.b16 %v1146
    %v1243 = vunpack.c.h.b16 %v1146
    %v1244 = vunpack.c.l.b16 %v1147
    %v1245 = vunpack.c.h.b16 %v1147
    %v1246 = vunpack.c.l.b16 %v1148
    %v1247 = vunpack.c.h.b16 %v1148
    %v1248 = vunpack.c.l.b16 %v1149
    %v1249 = vunpack.c.h.b16 %v1149
    %v1250 = vunpack.c.l.b16 %v1150
    %v1251 = vunpack.c.h.b16 %v1150
    %v1252 = vunpack.c.l.b16 %v1151
    %v1253 = vunpack.c.h.b16 %v1151
    %v1254 = vunpack.c.l.b16 %v1152
    %v1255 = vunpack.c.h.b16 %v1152
    %v1256 = vunpack.c.l.b16 %v1153
    %v1257 = vunpack.c.h.b16 %v1153
    %v1258 = vunpack.c.l.b16 %v1154
    %v1259 = vunpack.c.h.b16 %v1154
    %v1260 = vunpack.c.l.b16 %v1155
    %v1261 = vunpack.c.h.b16 %v1155
    %v1262 = vunpack.c.l.b16 %v1156
    %v1263 = vunpack.c.h.b16 %v1156
    %v1264 = vunpack.c.l.b16 %v1157
    %v1265 = vunpack.c.h.b16 %v1157
    %v1266 = vpack.c.b16 %v1204, %v1202
    %v1267 = vpack.c.b16 %v1205, %v1203
    %v1268 = vpack.c.b16 %v1208, %v1206
    %v1269 = vpack.c.b16 %v1209, %v1207
    %v1270 = vpack.c.b16 %v1212, %v1210
    %v1271 = vpack.c.b16 %v1213, %v1211
    %v1272 = vpack.c.b16 %v1216, %v1214
    %v1273 = vpack.c.b16 %v1217, %v1215
    %v1274 = vpack.c.b16 %v1220, %v1218
    %v1275 = vpack.c.b16 %v1221, %v1219
    %v1276 = vpack.c.b16 %v1224, %v1222
    %v1277 = vpack.c.b16 %v1225, %v1223
    %v1278 = vpack.c.b16 %v1228, %v1226
    %v1279 = vpack.c.b16 %v1229, %v1227
    %v1280 = vpack.c.b16 %v1232, %v1230
    %v1281 = vpack.c.b16 %v1233, %v1231
    %v1282 = vpack.c.b16 %v1236, %v1234
    %v1283 = vpack.c.b16 %v1237, %v1235
    %v1284 = vpack.c.b16 %v1240, %v1238
    %v1285 = vpack.c.b16 %v1241, %v1239
    %v1286 = vpack.c.b16 %v1244, %v1242
    %v1287 = vpack.c.b16 %v1245, %v1243
    %v1288 = vpack.c.b16 %v1248, %v1246
    %v1289 = vpack.c.b16 %v1249, %v1247
    %v1290 = vpack.c.b16 %v1252, %v1250
    %v1291 = vpack.c.b16 %v1253, %v1251
    %v1292 = vpack.c.b16 %v1256, %v1254
    %v1293 = vpack.c.b16 %v1257, %v1255
    %v1294 = vpack.c.b16 %v1260, %v1258
    %v1295 = vpack.c.b16 %v1261, %v1259
    %v1296 = vpack.c.b16 %v1264, %v1262
    %v1297 = vpack.c.b16 %v1265, %v1263
    %1330 = vmatprep.subr.bf16.mxu0 %v1281
    %1331 = vmatpush1.bf16.msra.mxu0 %v1280
    %1332 = vmatprep.subr.bf16.mxu0 %v1279
    %1333 = vmatpush1.bf16.msra.mxu0 %v1278
    %1334 = vmatprep.subr.bf16.mxu0 %v1277
    %1335 = vmatpush1.bf16.msra.mxu0 %v1276
    %1336 = vmatprep.subr.bf16.mxu0 %v1275
    %1337 = vmatpush1.bf16.msra.mxu0 %v1274
    %1338 = vmatprep.subr.bf16.mxu0 %v1273
    %1339 = vmatpush1.bf16.msra.mxu0 %v1272
    %1340 = vmatprep.subr.bf16.mxu0 %v1271
    %1341 = vmatpush1.bf16.msra.mxu0 %v1270
    %1342 = vmatprep.subr.bf16.mxu0 %v1269
    %1343 = vmatpush1.bf16.msra.mxu0 %v1268
    %1344 = vmatprep.subr.bf16.mxu0 %v1267
    %1345 = vmatpush1.bf16.msra.mxu0 %v1266
    %1346 = vmatprep.subr.bf16.mxu0 %v1297
    %1347 = vmatpush2.bf16.msra.mxu0 %v1296
    %1348 = vmatprep.subr.bf16.mxu0 %v1295
    %1349 = vmatpush2.bf16.msra.mxu0 %v1294
    %1350 = vmatprep.subr.bf16.mxu0 %v1293
    %1351 = vmatpush2.bf16.msra.mxu0 %v1292
    %1352 = vmatprep.subr.bf16.mxu0 %v1291
    %1353 = vmatpush2.bf16.msra.mxu0 %v1290
    %1354 = vmatprep.subr.bf16.mxu0 %v1289
    %1355 = vmatpush2.bf16.msra.mxu0 %v1288
    %1356 = vmatprep.subr.bf16.mxu0 %v1287
    %1357 = vmatpush2.bf16.msra.mxu0 %v1286
    %1358 = vmatprep.subr.bf16.mxu0 %v1285
    %1359 = vmatpush2.bf16.msra.mxu0 %v1284
    %1360 = vmatprep.subr.bf16.mxu0 %v1283
    %1361 = vmatpush2.bf16.msra.mxu0 %v1282
    %1362 = vmatprep.mubr.bf16.mxu0 %v1125
    %1363 = vmatmul.mubr.bf16.gmra.mxu0 %v1124
    %v1364 = vpop.f32.mrf.mxu0
    %v1365 = vadd.f32 %v1163, %v1364
    %v1366 = vpop.f32.mrf.mxu0
    %v1367 = vadd.f32 %v1167, %v1366
    %v1368 = vpop.f32.mrf.mxu0
    %v1369 = vpop.f32.mrf.mxu0
    %1370 = vdwg.mxu0
    %v1371 = vtanh.pop %v1365
    %v1372 = vtanh.pop %v1367
    %v1373 = vld [vmem:[%s8] sm:$0x3]
    %v1375 = vlaneseq
    %v1376 = vshrl.u32 %v1375, 7
    %v1377 = vsub.s32 0, %v1376
    %v1378 = vrot.slane %v1373, %v1377
    %v1379 = vlaneseq
    %v1380 = vshrl.u32 %v1379, 7
    %v1381 = vsub.s32 1, %v1380
    %v1382 = vrot.slane %v1373, %v1381
    %v1385 = vmul.f32 %v1371, %v1378
    %v1386 = vmul.f32 %v1372, %v1382
    %v1387 = vadd.f32 %v1385, %v1386
    %1388 = vadd.xlane.f32.xlu0 %v1387
    %v1389 = vpop.xlane.xlu0 %1388
    %v1390 = vpack.c.bf16 %v1118, %v1118
    %v1391 = vpack.c.bf16 %v1120, %v1120
    %v1392 = vld [vmem:[#allocation11] sm:$0xff]
    %v1393 = vld [vmem:[#allocation11 + $0x8] sm:$0xff]
    %v1394 = vld [vmem:[#allocation11 + $0x10] sm:$0xff]
    %v1395 = vld [vmem:[#allocation11 + $0x18] sm:$0xff]
    %v1396 = vld [vmem:[#allocation11 + $0x20] sm:$0xff]
    %v1397 = vld [vmem:[#allocation11 + $0x28] sm:$0xff]
    %v1398 = vld [vmem:[#allocation11 + $0x30] sm:$0xff]
    %v1399 = vld [vmem:[#allocation11 + $0x38] sm:$0xff]
    %v1400 = vld [vmem:[#allocation11 + $0x40] sm:$0xff]
    %v1401 = vld [vmem:[#allocation11 + $0x48] sm:$0xff]
    %v1402 = vld [vmem:[#allocation11 + $0x50] sm:$0xff]
    %v1403 = vld [vmem:[#allocation11 + $0x58] sm:$0xff]
    %v1404 = vld [vmem:[#allocation11 + $0x60] sm:$0xff]
    %v1405 = vld [vmem:[#allocation11 + $0x68] sm:$0xff]
    %v1406 = vld [vmem:[#allocation11 + $0x70] sm:$0xff]
    %v1407 = vld [vmem:[#allocation11 + $0x78] sm:$0xff]
    %v1408 = vld [vmem:[#allocation11 + $0x80] sm:$0xff]
    %v1409 = vld [vmem:[#allocation11 + $0x88] sm:$0xff]
    %v1410 = vld [vmem:[#allocation11 + $0x90] sm:$0xff]
    %v1411 = vld [vmem:[#allocation11 + $0x98] sm:$0xff]
    %v1412 = vld [vmem:[#allocation11 + $0xa0] sm:$0xff]
    %v1413 = vld [vmem:[#allocation11 + $0xa8] sm:$0xff]
    %v1414 = vld [vmem:[#allocation11 + $0xb0] sm:$0xff]
    %v1415 = vld [vmem:[#allocation11 + $0xb8] sm:$0xff]
    %v1416 = vld [vmem:[#allocation11 + $0xc0] sm:$0xff]
    %v1417 = vld [vmem:[#allocation11 + $0xc8] sm:$0xff]
    %v1418 = vld [vmem:[#allocation11 + $0xd0] sm:$0xff]
    %v1419 = vld [vmem:[#allocation11 + $0xd8] sm:$0xff]
    %v1420 = vld [vmem:[#allocation11 + $0xe0] sm:$0xff]
    %v1421 = vld [vmem:[#allocation11 + $0xe8] sm:$0xff]
    %v1422 = vld [vmem:[#allocation11 + $0xf0] sm:$0xff]
    %v1423 = vld [vmem:[#allocation11 + $0xf8] sm:$0xff]
    %v1424 = vld [vmem:[%s10] sm:$0x3]
    %v1426 = vlaneseq
    %v1427 = vshrl.u32 %v1426, 7
    %v1428 = vsub.s32 0, %v1427
    %v1429 = vrot.slane %v1424, %v1428
    %v1430 = vlaneseq
    %v1431 = vshrl.u32 %v1430, 7
    %v1432 = vsub.s32 1, %v1431
    %v1433 = vrot.slane %v1424, %v1432
    %v1468 = vunpack.c.l.b16 %v1392
    %v1469 = vunpack.c.h.b16 %v1392
    %v1470 = vunpack.c.l.b16 %v1393
    %v1471 = vunpack.c.h.b16 %v1393
    %v1472 = vunpack.c.l.b16 %v1394
    %v1473 = vunpack.c.h.b16 %v1394
    %v1474 = vunpack.c.l.b16 %v1395
    %v1475 = vunpack.c.h.b16 %v1395
    %v1476 = vunpack.c.l.b16 %v1396
    %v1477 = vunpack.c.h.b16 %v1396
    %v1478 = vunpack.c.l.b16 %v1397
    %v1479 = vunpack.c.h.b16 %v1397
    %v1480 = vunpack.c.l.b16 %v1398
    %v1481 = vunpack.c.h.b16 %v1398
    %v1482 = vunpack.c.l.b16 %v1399
    %v1483 = vunpack.c.h.b16 %v1399
    %v1484 = vunpack.c.l.b16 %v1400
    %v1485 = vunpack.c.h.b16 %v1400
    %v1486 = vunpack.c.l.b16 %v1401
    %v1487 = vunpack.c.h.b16 %v1401
    %v1488 = vunpack.c.l.b16 %v1402
    %v1489 = vunpack.c.h.b16 %v1402
    %v1490 = vunpack.c.l.b16 %v1403
    %v1491 = vunpack.c.h.b16 %v1403
    %v1492 = vunpack.c.l.b16 %v1404
    %v1493 = vunpack.c.h.b16 %v1404
    %v1494 = vunpack.c.l.b16 %v1405
    %v1495 = vunpack.c.h.b16 %v1405
    %v1496 = vunpack.c.l.b16 %v1406
    %v1497 = vunpack.c.h.b16 %v1406
    %v1498 = vunpack.c.l.b16 %v1407
    %v1499 = vunpack.c.h.b16 %v1407
    %v1500 = vunpack.c.l.b16 %v1408
    %v1501 = vunpack.c.h.b16 %v1408
    %v1502 = vunpack.c.l.b16 %v1409
    %v1503 = vunpack.c.h.b16 %v1409
    %v1504 = vunpack.c.l.b16 %v1410
    %v1505 = vunpack.c.h.b16 %v1410
    %v1506 = vunpack.c.l.b16 %v1411
    %v1507 = vunpack.c.h.b16 %v1411
    %v1508 = vunpack.c.l.b16 %v1412
    %v1509 = vunpack.c.h.b16 %v1412
    %v1510 = vunpack.c.l.b16 %v1413
    %v1511 = vunpack.c.h.b16 %v1413
    %v1512 = vunpack.c.l.b16 %v1414
    %v1513 = vunpack.c.h.b16 %v1414
    %v1514 = vunpack.c.l.b16 %v1415
    %v1515 = vunpack.c.h.b16 %v1415
    %v1516 = vunpack.c.l.b16 %v1416
    %v1517 = vunpack.c.h.b16 %v1416
    %v1518 = vunpack.c.l.b16 %v1417
    %v1519 = vunpack.c.h.b16 %v1417
    %v1520 = vunpack.c.l.b16 %v1418
    %v1521 = vunpack.c.h.b16 %v1418
    %v1522 = vunpack.c.l.b16 %v1419
    %v1523 = vunpack.c.h.b16 %v1419
    %v1524 = vunpack.c.l.b16 %v1420
    %v1525 = vunpack.c.h.b16 %v1420
    %v1526 = vunpack.c.l.b16 %v1421
    %v1527 = vunpack.c.h.b16 %v1421
    %v1528 = vunpack.c.l.b16 %v1422
    %v1529 = vunpack.c.h.b16 %v1422
    %v1530 = vunpack.c.l.b16 %v1423
    %v1531 = vunpack.c.h.b16 %v1423
    %v1532 = vpack.c.b16 %v1470, %v1468
    %v1533 = vpack.c.b16 %v1471, %v1469
    %v1534 = vpack.c.b16 %v1474, %v1472
    %v1535 = vpack.c.b16 %v1475, %v1473
    %v1536 = vpack.c.b16 %v1478, %v1476
    %v1537 = vpack.c.b16 %v1479, %v1477
    %v1538 = vpack.c.b16 %v1482, %v1480
    %v1539 = vpack.c.b16 %v1483, %v1481
    %v1540 = vpack.c.b16 %v1486, %v1484
    %v1541 = vpack.c.b16 %v1487, %v1485
    %v1542 = vpack.c.b16 %v1490, %v1488
    %v1543 = vpack.c.b16 %v1491, %v1489
    %v1544 = vpack.c.b16 %v1494, %v1492
    %v1545 = vpack.c.b16 %v1495, %v1493
    %v1546 = vpack.c.b16 %v1498, %v1496
    %v1547 = vpack.c.b16 %v1499, %v1497
    %v1548 = vpack.c.b16 %v1502, %v1500
    %v1549 = vpack.c.b16 %v1503, %v1501
    %v1550 = vpack.c.b16 %v1506, %v1504
    %v1551 = vpack.c.b16 %v1507, %v1505
    %v1552 = vpack.c.b16 %v1510, %v1508
    %v1553 = vpack.c.b16 %v1511, %v1509
    %v1554 = vpack.c.b16 %v1514, %v1512
    %v1555 = vpack.c.b16 %v1515, %v1513
    %v1556 = vpack.c.b16 %v1518, %v1516
    %v1557 = vpack.c.b16 %v1519, %v1517
    %v1558 = vpack.c.b16 %v1522, %v1520
    %v1559 = vpack.c.b16 %v1523, %v1521
    %v1560 = vpack.c.b16 %v1526, %v1524
    %v1561 = vpack.c.b16 %v1527, %v1525
    %v1562 = vpack.c.b16 %v1530, %v1528
    %v1563 = vpack.c.b16 %v1531, %v1529
    %1596 = vmatprep.subr.bf16.mxu0 %v1547
    %1597 = vmatpush1.bf16.msra.mxu0 %v1546
    %1598 = vmatprep.subr.bf16.mxu0 %v1545
    %1599 = vmatpush1.bf16.msra.mxu0 %v1544
    %1600 = vmatprep.subr.bf16.mxu0 %v1543
    %1601 = vmatpush1.bf16.msra.mxu0 %v1542
    %1602 = vmatprep.subr.bf16.mxu0 %v1541
    %1603 = vmatpush1.bf16.msra.mxu0 %v1540
    %1604 = vmatprep.subr.bf16.mxu0 %v1539
    %1605 = vmatpush1.bf16.msra.mxu0 %v1538
    %1606 = vmatprep.subr.bf16.mxu0 %v1537
    %1607 = vmatpush1.bf16.msra.mxu0 %v1536
    %1608 = vmatprep.subr.bf16.mxu0 %v1535
    %1609 = vmatpush1.bf16.msra.mxu0 %v1534
    %1610 = vmatprep.subr.bf16.mxu0 %v1533
    %1611 = vmatpush1.bf16.msra.mxu0 %v1532
    %1612 = vmatprep.subr.bf16.mxu0 %v1563
    %1613 = vmatpush2.bf16.msra.mxu0 %v1562
    %1614 = vmatprep.subr.bf16.mxu0 %v1561
    %1615 = vmatpush2.bf16.msra.mxu0 %v1560
    %1616 = vmatprep.subr.bf16.mxu0 %v1559
    %1617 = vmatpush2.bf16.msra.mxu0 %v1558
    %1618 = vmatprep.subr.bf16.mxu0 %v1557
    %1619 = vmatpush2.bf16.msra.mxu0 %v1556
    %1620 = vmatprep.subr.bf16.mxu0 %v1555
    %1621 = vmatpush2.bf16.msra.mxu0 %v1554
    %1622 = vmatprep.subr.bf16.mxu0 %v1553
    %1623 = vmatpush2.bf16.msra.mxu0 %v1552
    %1624 = vmatprep.subr.bf16.mxu0 %v1551
    %1625 = vmatpush2.bf16.msra.mxu0 %v1550
    %1626 = vmatprep.subr.bf16.mxu0 %v1549
    %1627 = vmatpush2.bf16.msra.mxu0 %v1548
    %1628 = vmatprep.mubr.bf16.mxu0 %v1391
    %1629 = vmatmul.mubr.bf16.gmra.mxu0 %v1390
    %v1630 = vpop.f32.mrf.mxu0
    %v1631 = vadd.f32 %v1429, %v1630
    %v1632 = vpop.f32.mrf.mxu0
    %v1633 = vadd.f32 %v1433, %v1632
    %v1634 = vpop.f32.mrf.mxu0
    %v1635 = vpop.f32.mrf.mxu0
    %1636 = vdwg.mxu0
    %v1637 = vtanh.pop %v1631
    %v1638 = vtanh.pop %v1633
    %v1639 = vld [vmem:[%s11] sm:$0x3]
    %v1641 = vlaneseq
    %v1642 = vshrl.u32 %v1641, 7
    %v1643 = vsub.s32 0, %v1642
    %v1644 = vrot.slane %v1639, %v1643
    %v1645 = vlaneseq
    %v1646 = vshrl.u32 %v1645, 7
    %v1647 = vsub.s32 1, %v1646
    %v1648 = vrot.slane %v1639, %v1647
    %v1651 = vmul.f32 %v1637, %v1644
    %v1652 = vmul.f32 %v1638, %v1648
    %v1653 = vadd.f32 %v1651, %v1652
    %1654 = vadd.xlane.f32.xlu0 %v1653
    %v1655 = vpop.xlane.xlu0 %1654
    %v1656 = vsub.f32 %v1655, %v1389
    %v1657 = vmul.f32 %v1656, 1.442695
    %v1658 = vpow.pop %v1657
    %v1659 = vadd.f32 %v1658, 1.0
    %v1660 = vrcp.pop %v1659
    %v1661 = vmul.f32 1.0, %v1660
    %v1662 = vmul.f32 %v1661, %v640
    %v1663 = vmul.f32 %v1661, %v642
    %v1664 = vsub.f32 1.0, %v1661
    %v1665 = vmul.f32 %v1664, %v1118
    %v1666 = vmul.f32 %v1664, %v1120
    %v1667 = vadd.f32 %v1662, %v1665
    %v1668 = vadd.f32 %v1663, %v1666
    %v1669 = vrot.slane %v1667, 4
    %v1670 = vadd.f32 %v1667, %v1669
    %v1671 = vrot.slane %v1670, 2
    %v1672 = vadd.f32 %v1670, %v1671
    %v1673 = vrot.slane %v1672, 1
    %v1674 = vadd.f32 %v1672, %v1673
    %v1675 = vrot.slane %v1668, 4
    %v1676 = vadd.f32 %v1668, %v1675
    %v1677 = vrot.slane %v1676, 2
    %v1678 = vadd.f32 %v1676, %v1677
    %v1679 = vrot.slane %v1678, 1
    %v1680 = vadd.f32 %v1678, %v1679
    %v1681 = vrcp.pop 8.0
    %v1682 = vmul.f32 %v1674, %v1681
    %v1683 = vmul.f32 %v1680, %v1681
    %v1684 = vsub.f32 %v1667, %v1682
    %v1685 = vsub.f32 %v1668, %v1683
    %v1686 = vmul.f32 %v1684, %v1684
    %v1687 = vmul.f32 %v1685, %v1685
    %v1688 = vrot.slane %v1686, 4
    %v1689 = vadd.f32 %v1686, %v1688
    %v1690 = vrot.slane %v1689, 2
    %v1691 = vadd.f32 %v1689, %v1690
    %v1692 = vrot.slane %v1691, 1
    %v1693 = vadd.f32 %v1691, %v1692
    %v1694 = vrot.slane %v1687, 4
    %v1695 = vadd.f32 %v1687, %v1694
    %v1696 = vrot.slane %v1695, 2
    %v1697 = vadd.f32 %v1695, %v1696
    %v1698 = vrot.slane %v1697, 1
    %v1699 = vadd.f32 %v1697, %v1698
    %v1700 = vmul.f32 %v1693, %v1681
    %v1701 = vmul.f32 %v1699, %v1681
    %v1702 = vadd.f32 %v1700, 1e-05
    %v1703 = vadd.f32 %v1701, 1e-05
    %v1704 = vrsqrt.pop %v1702
    %v1705 = vrsqrt.pop %v1703
    %v1706 = vmul.f32 %v1684, %v1704
    %v1707 = vmul.f32 %v1685, %v1705
    %v1708 = vld [vmem:[%s12] sm:$0x3]
    %v1710 = vlaneseq
    %v1711 = vshrl.u32 %v1710, 7
    %v1712 = vsub.s32 0, %v1711
    %v1713 = vrot.slane %v1708, %v1712
    %v1714 = vlaneseq
    %v1715 = vshrl.u32 %v1714, 7
    %v1716 = vsub.s32 1, %v1715
    %v1717 = vrot.slane %v1708, %v1716
    %v1720 = vmul.f32 %v1706, %v1713
    %v1721 = vmul.f32 %v1707, %v1717
    %v1722 = vld [vmem:[%s13] sm:$0x3]
    %v1724 = vlaneseq
    %v1725 = vshrl.u32 %v1724, 7
    %v1726 = vsub.s32 0, %v1725
    %v1727 = vrot.slane %v1722, %v1726
    %v1728 = vlaneseq
    %v1729 = vshrl.u32 %v1728, 7
    %v1730 = vsub.s32 1, %v1729
    %v1731 = vrot.slane %v1722, %v1730
    %v1734 = vadd.f32 %v1720, %v1727
    %v1735 = vadd.f32 %v1721, %v1731
    %v1736 = vpack.c.bf16 %v1734, %v1734
    %v1737 = vpack.c.bf16 %v1735, %v1735
    %v1738 = vld [vmem:[#allocation13] sm:$0xff]
    %v1739 = vld [vmem:[#allocation13 + $0x8] sm:$0xff]
    %v1740 = vld [vmem:[#allocation13 + $0x10] sm:$0xff]
    %v1741 = vld [vmem:[#allocation13 + $0x18] sm:$0xff]
    %v1742 = vld [vmem:[#allocation13 + $0x20] sm:$0xff]
    %v1743 = vld [vmem:[#allocation13 + $0x28] sm:$0xff]
    %v1744 = vld [vmem:[#allocation13 + $0x30] sm:$0xff]
    %v1745 = vld [vmem:[#allocation13 + $0x38] sm:$0xff]
    %v1746 = vld [vmem:[#allocation13 + $0x40] sm:$0xff]
    %v1747 = vld [vmem:[#allocation13 + $0x48] sm:$0xff]
    %v1748 = vld [vmem:[#allocation13 + $0x50] sm:$0xff]
    %v1749 = vld [vmem:[#allocation13 + $0x58] sm:$0xff]
    %v1750 = vld [vmem:[#allocation13 + $0x60] sm:$0xff]
    %v1751 = vld [vmem:[#allocation13 + $0x68] sm:$0xff]
    %v1752 = vld [vmem:[#allocation13 + $0x70] sm:$0xff]
    %v1753 = vld [vmem:[#allocation13 + $0x78] sm:$0xff]
    %v1754 = vld [vmem:[#allocation13 + $0x80] sm:$0xff]
    %v1755 = vld [vmem:[#allocation13 + $0x88] sm:$0xff]
    %v1756 = vld [vmem:[#allocation13 + $0x90] sm:$0xff]
    %v1757 = vld [vmem:[#allocation13 + $0x98] sm:$0xff]
    %v1758 = vld [vmem:[#allocation13 + $0xa0] sm:$0xff]
    %v1759 = vld [vmem:[#allocation13 + $0xa8] sm:$0xff]
    %v1760 = vld [vmem:[#allocation13 + $0xb0] sm:$0xff]
    %v1761 = vld [vmem:[#allocation13 + $0xb8] sm:$0xff]
    %v1762 = vld [vmem:[#allocation13 + $0xc0] sm:$0xff]
    %v1763 = vld [vmem:[#allocation13 + $0xc8] sm:$0xff]
    %v1764 = vld [vmem:[#allocation13 + $0xd0] sm:$0xff]
    %v1765 = vld [vmem:[#allocation13 + $0xd8] sm:$0xff]
    %v1766 = vld [vmem:[#allocation13 + $0xe0] sm:$0xff]
    %v1767 = vld [vmem:[#allocation13 + $0xe8] sm:$0xff]
    %v1768 = vld [vmem:[#allocation13 + $0xf0] sm:$0xff]
    %v1769 = vld [vmem:[#allocation13 + $0xf8] sm:$0xff]
    %v1770 = vld [vmem:[%s15] sm:$0x3]
    %v1772 = vlaneseq
    %v1773 = vshrl.u32 %v1772, 7
    %v1774 = vsub.s32 0, %v1773
    %v1775 = vrot.slane %v1770, %v1774
    %v1776 = vlaneseq
    %v1777 = vshrl.u32 %v1776, 7
    %v1778 = vsub.s32 1, %v1777
    %v1779 = vrot.slane %v1770, %v1778
    %v1814 = vunpack.c.l.b16 %v1738
    %v1815 = vunpack.c.h.b16 %v1738
    %v1816 = vunpack.c.l.b16 %v1739
    %v1817 = vunpack.c.h.b16 %v1739
    %v1818 = vunpack.c.l.b16 %v1740
    %v1819 = vunpack.c.h.b16 %v1740
    %v1820 = vunpack.c.l.b16 %v1741
    %v1821 = vunpack.c.h.b16 %v1741
    %v1822 = vunpack.c.l.b16 %v1742
    %v1823 = vunpack.c.h.b16 %v1742
    %v1824 = vunpack.c.l.b16 %v1743
    %v1825 = vunpack.c.h.b16 %v1743
    %v1826 = vunpack.c.l.b16 %v1744
    %v1827 = vunpack.c.h.b16 %v1744
    %v1828 = vunpack.c.l.b16 %v1745
    %v1829 = vunpack.c.h.b16 %v1745
    %v1830 = vunpack.c.l.b16 %v1746
    %v1831 = vunpack.c.h.b16 %v1746
    %v1832 = vunpack.c.l.b16 %v1747
    %v1833 = vunpack.c.h.b16 %v1747
    %v1834 = vunpack.c.l.b16 %v1748
    %v1835 = vunpack.c.h.b16 %v1748
    %v1836 = vunpack.c.l.b16 %v1749
    %v1837 = vunpack.c.h.b16 %v1749
    %v1838 = vunpack.c.l.b16 %v1750
    %v1839 = vunpack.c.h.b16 %v1750
    %v1840 = vunpack.c.l.b16 %v1751
    %v1841 = vunpack.c.h.b16 %v1751
    %v1842 = vunpack.c.l.b16 %v1752
    %v1843 = vunpack.c.h.b16 %v1752
    %v1844 = vunpack.c.l.b16 %v1753
    %v1845 = vunpack.c.h.b16 %v1753
    %v1846 = vunpack.c.l.b16 %v1754
    %v1847 = vunpack.c.h.b16 %v1754
    %v1848 = vunpack.c.l.b16 %v1755
    %v1849 = vunpack.c.h.b16 %v1755
    %v1850 = vunpack.c.l.b16 %v1756
    %v1851 = vunpack.c.h.b16 %v1756
    %v1852 = vunpack.c.l.b16 %v1757
    %v1853 = vunpack.c.h.b16 %v1757
    %v1854 = vunpack.c.l.b16 %v1758
    %v1855 = vunpack.c.h.b16 %v1758
    %v1856 = vunpack.c.l.b16 %v1759
    %v1857 = vunpack.c.h.b16 %v1759
    %v1858 = vunpack.c.l.b16 %v1760
    %v1859 = vunpack.c.h.b16 %v1760
    %v1860 = vunpack.c.l.b16 %v1761
    %v1861 = vunpack.c.h.b16 %v1761
    %v1862 = vunpack.c.l.b16 %v1762
    %v1863 = vunpack.c.h.b16 %v1762
    %v1864 = vunpack.c.l.b16 %v1763
    %v1865 = vunpack.c.h.b16 %v1763
    %v1866 = vunpack.c.l.b16 %v1764
    %v1867 = vunpack.c.h.b16 %v1764
    %v1868 = vunpack.c.l.b16 %v1765
    %v1869 = vunpack.c.h.b16 %v1765
    %v1870 = vunpack.c.l.b16 %v1766
    %v1871 = vunpack.c.h.b16 %v1766
    %v1872 = vunpack.c.l.b16 %v1767
    %v1873 = vunpack.c.h.b16 %v1767
    %v1874 = vunpack.c.l.b16 %v1768
    %v1875 = vunpack.c.h.b16 %v1768
    %v1876 = vunpack.c.l.b16 %v1769
    %v1877 = vunpack.c.h.b16 %v1769
    %v1878 = vpack.c.b16 %v1816, %v1814
    %v1879 = vpack.c.b16 %v1817, %v1815
    %v1880 = vpack.c.b16 %v1820, %v1818
    %v1881 = vpack.c.b16 %v1821, %v1819
    %v1882 = vpack.c.b16 %v1824, %v1822
    %v1883 = vpack.c.b16 %v1825, %v1823
    %v1884 = vpack.c.b16 %v1828, %v1826
    %v1885 = vpack.c.b16 %v1829, %v1827
    %v1886 = vpack.c.b16 %v1832, %v1830
    %v1887 = vpack.c.b16 %v1833, %v1831
    %v1888 = vpack.c.b16 %v1836, %v1834
    %v1889 = vpack.c.b16 %v1837, %v1835
    %v1890 = vpack.c.b16 %v1840, %v1838
    %v1891 = vpack.c.b16 %v1841, %v1839
    %v1892 = vpack.c.b16 %v1844, %v1842
    %v1893 = vpack.c.b16 %v1845, %v1843
    %v1894 = vpack.c.b16 %v1848, %v1846
    %v1895 = vpack.c.b16 %v1849, %v1847
    %v1896 = vpack.c.b16 %v1852, %v1850
    %v1897 = vpack.c.b16 %v1853, %v1851
    %v1898 = vpack.c.b16 %v1856, %v1854
    %v1899 = vpack.c.b16 %v1857, %v1855
    %v1900 = vpack.c.b16 %v1860, %v1858
    %v1901 = vpack.c.b16 %v1861, %v1859
    %v1902 = vpack.c.b16 %v1864, %v1862
    %v1903 = vpack.c.b16 %v1865, %v1863
    %v1904 = vpack.c.b16 %v1868, %v1866
    %v1905 = vpack.c.b16 %v1869, %v1867
    %v1906 = vpack.c.b16 %v1872, %v1870
    %v1907 = vpack.c.b16 %v1873, %v1871
    %v1908 = vpack.c.b16 %v1876, %v1874
    %v1909 = vpack.c.b16 %v1877, %v1875
    %1942 = vmatprep.subr.bf16.mxu0 %v1893
    %1943 = vmatpush1.bf16.msra.mxu0 %v1892
    %1944 = vmatprep.subr.bf16.mxu0 %v1891
    %1945 = vmatpush1.bf16.msra.mxu0 %v1890
    %1946 = vmatprep.subr.bf16.mxu0 %v1889
    %1947 = vmatpush1.bf16.msra.mxu0 %v1888
    %1948 = vmatprep.subr.bf16.mxu0 %v1887
    %1949 = vmatpush1.bf16.msra.mxu0 %v1886
    %1950 = vmatprep.subr.bf16.mxu0 %v1885
    %1951 = vmatpush1.bf16.msra.mxu0 %v1884
    %1952 = vmatprep.subr.bf16.mxu0 %v1883
    %1953 = vmatpush1.bf16.msra.mxu0 %v1882
    %1954 = vmatprep.subr.bf16.mxu0 %v1881
    %1955 = vmatpush1.bf16.msra.mxu0 %v1880
    %1956 = vmatprep.subr.bf16.mxu0 %v1879
    %1957 = vmatpush1.bf16.msra.mxu0 %v1878
    %1958 = vmatprep.subr.bf16.mxu0 %v1909
    %1959 = vmatpush2.bf16.msra.mxu0 %v1908
    %1960 = vmatprep.subr.bf16.mxu0 %v1907
    %1961 = vmatpush2.bf16.msra.mxu0 %v1906
    %1962 = vmatprep.subr.bf16.mxu0 %v1905
    %1963 = vmatpush2.bf16.msra.mxu0 %v1904
    %1964 = vmatprep.subr.bf16.mxu0 %v1903
    %1965 = vmatpush2.bf16.msra.mxu0 %v1902
    %1966 = vmatprep.subr.bf16.mxu0 %v1901
    %1967 = vmatpush2.bf16.msra.mxu0 %v1900
    %1968 = vmatprep.subr.bf16.mxu0 %v1899
    %1969 = vmatpush2.bf16.msra.mxu0 %v1898
    %1970 = vmatprep.subr.bf16.mxu0 %v1897
    %1971 = vmatpush2.bf16.msra.mxu0 %v1896
    %1972 = vmatprep.subr.bf16.mxu0 %v1895
    %1973 = vmatpush2.bf16.msra.mxu0 %v1894
    %1974 = vmatprep.mubr.bf16.mxu0 %v1737
    %1975 = vmatmul.mubr.bf16.gmra.mxu0 %v1736
    %v1976 = vpop.f32.mrf.mxu0
    %v1977 = vadd.f32 %v1775, %v1976
    %v1978 = vpop.f32.mrf.mxu0
    %v1979 = vadd.f32 %v1779, %v1978
    %v1980 = vpop.f32.mrf.mxu0
    %v1981 = vpop.f32.mrf.mxu0
    %1982 = vdwg.mxu0
    %v1983 = vmax.f32 %v1977, 0.0
    %v1984 = vmax.f32 %v1979, 0.0
    %v1985 = vld [vmem:[%s16] sm:$0x3]
    %v1987 = vlaneseq
    %v1988 = vshrl.u32 %v1987, 7
    %v1989 = vsub.s32 0, %v1988
    %v1990 = vrot.slane %v1985, %v1989
    %v1991 = vlaneseq
    %v1992 = vshrl.u32 %v1991, 7
    %v1993 = vsub.s32 1, %v1992
    %v1994 = vrot.slane %v1985, %v1993
    %v1997 = vmul.f32 %v1983, %v1990
    %v1998 = vmul.f32 %v1984, %v1994
    %v1999 = vadd.f32 %v1997, %v1998
    %2000 = vadd.xlane.f32.xlu0 %v1999
    %v2001 = vpop.xlane.xlu0 %2000
    %v2002 = vld [vmem:[#allocation2] sm:$0x1]
    %v2004 = vlaneseq
    %v2005 = vshrl.u32 %v2004, 7
    %v2006 = vsub.s32 0, %v2005
    %v2007 = vrot.slane %v2002, %v2006
    %v2009 = vadd.f32 %v2001, %v2007
    %v2010 = vsub.f32 0.0, %v2009
    %v2011 = vmul.f32 %v2010, 1.442695
    %v2012 = vpow.pop %v2011
    %v2013 = vadd.f32 %v2012, 1.0
    %v2014 = vrcp.pop %v2013
    %v2015 = vmul.f32 1.0, %v2014
    %v2016 = vlaneseq
    %v2017 = vand.u32 %v2016, 127
    %vm2018 = vcmp.eq.s32.totalorder %v2017, 0
    %v2019 = vsub.f32 1.0, %v2015
    %2021 = vset.pattern.permute.xlu0 0
    %2022 = vperm.xlu0 %2021, %v2015
    %v2023 = vpop.permute.xlu0 %2022
    %2026 = vset.pattern.permute.xlu0 0
    %2027 = vperm.xlu0 %2026, %v2019
    %v2028 = vpop.permute.xlu0 %2027
    %v2030 = vsel %vm2018, %v2023, %v2028
    %vm2031 = vcmask 15360
    %2032 = vst.msk [vmem:[%s18] sm:$0xff] %vm2031, %v2030
    // Predicated region
    $region102: #{parception_branch_forward.1} parent=1 // pred_check
      _
    $region103: #{parception_branch_forward.1} parent=1 // pred_check_branch
      %2034 = sbr.rel (0) target = $region105
    $region104: #{parception_branch_forward.1} parent=1 // pred_region
      _
    $region105: #{parception_branch_forward.1} parent=1 // pred_fallthru
      _
    // Predicated region
    $region106: #{parception_branch_forward.1} parent=1 // pred_check
      _
    $region107: #{parception_branch_forward.1} parent=1 // pred_check_branch
      %2036 = sbr.rel (0) target = $region109
    $region108: #{parception_branch_forward.1} parent=1 // pred_region
      _
    $region109: #{parception_branch_forward.1} parent=1 // pred_fallthru
      _
    %2037 = vsyncpa [#allocation4], 1
    %2038 = vsyncpa [#allocation6], 1
    %2039 = vsyncpa [#allocation9], 1
    %2040 = vsyncpa [#allocation12], 1

</llo_original>
